<compile_context>
chip_gen: v7x
topology: tpu7x:2x2x1
jax: 0.10.0
libtpu: 0.0.40
codegen_flags: <defaults>
</compile_context>

<pallas_src>
import functools

import jax
import jax.numpy as jnp
from jax.experimental import pallas as pl
from jax.experimental.pallas import tpu as pltpu


def _sigmoid_via_tanh(z):
    # sigmoid(z) == 0.5 * (tanh(z / 2) + 1): one EUP push (tanh) instead of exp + divide.
    return 0.5 * jnp.tanh(0.5 * z) + 0.5


def _lstm_recurrence_kernel(xg_ref, w_hh_ref, h_out_ref, h_scr, c_scr, *,
                            hidden, lane_fused):
    """One grid step == one time-chunk for one batch-chunk.

    lane_fused (H % 128 == 0):
        xg_ref   : (Tc, Bc, 4H) bf16   x @ W_ih^T + b_ih + b_hh, gates (i,f,g,o) on lanes
        w_hh_ref : (H, 4H)      bf16   W_hh^T, gates concatenated on the lane axis
    gate-major (H not a multiple of 128, e.g. the demo's H=32):
        xg_ref   : (Tc, 4, Bc, H) bf16
        w_hh_ref : (4, H, H)      bf16 per-gate W_hh^T
    h_out_ref    : (Tc, Bc, H) bf16
    h_scr, c_scr : (Bc, H) f32 recurrent state, persists across the time grid axis.
    """
    H = hidden

    # Time is the innermost (fastest-varying) grid axis, so resetting the carried
    # state at time-chunk 0 is correct for every batch-chunk.  Do not reorder the grid.
    @pl.when(pl.program_id(1) == 0)
    def _():
        h_scr[...] = jnp.zeros_like(h_scr)
        c_scr[...] = jnp.zeros_like(c_scr)

    # Hoist the recurrent-weight loads out of the unrolled time loop.
    if lane_fused:
        w_all = w_hh_ref[...]                      # (H, 4H) bf16
    else:
        w_i = w_hh_ref[0]                          # (H, H) bf16 each
        w_f = w_hh_ref[1]
        w_g = w_hh_ref[2]
        w_o = w_hh_ref[3]

    def step(tt, carry):
        h_prev = h_scr[...]
        c_prev = c_scr[...]
        h_b = h_prev.astype(jnp.bfloat16)

        if lane_fused:
            # Single lane-filling MXU matmul for all four gates, f32 accumulation,
            # then free lane-aligned static slices (H is a multiple of 128).
            rec = jnp.dot(h_b, w_all, preferred_element_type=jnp.float32)  # (Bc, 4H)
            z = xg_ref[tt].astype(jnp.float32) + rec
            i_z = z[:, 0 * H:1 * H]
            f_z = z[:, 1 * H:2 * H]
            g_z = z[:, 2 * H:3 * H]
            o_z = z[:, 3 * H:4 * H]
        else:
            xg = xg_ref[tt]                        # (4, Bc, H) bf16
            i_z = xg[0].astype(jnp.float32) + jnp.dot(
                h_b, w_i, preferred_element_type=jnp.float32)
            f_z = xg[1].astype(jnp.float32) + jnp.dot(
                h_b, w_f, preferred_element_type=jnp.float32)
            g_z = xg[2].astype(jnp.float32) + jnp.dot(
                h_b, w_g, preferred_element_type=jnp.float32)
            o_z = xg[3].astype(jnp.float32) + jnp.dot(
                h_b, w_o, preferred_element_type=jnp.float32)

        i_g = _sigmoid_via_tanh(i_z)
        f_g = _sigmoid_via_tanh(f_z)
        o_g = _sigmoid_via_tanh(o_z)
        g_g = jnp.tanh(g_z)

        c_new = f_g * c_prev + i_g * g_g           # cell update kept in f32
        h_new = o_g * jnp.tanh(c_new)

        c_scr[...] = c_new
        h_scr[...] = h_new
        h_out_ref[tt] = h_new.astype(h_out_ref.dtype)
        return carry

    jax.lax.fori_loop(0, h_out_ref.shape[0], step, 0, unroll=True)


def _num_tensorcores():
    try:
        return max(1, int(getattr(jax.devices()[0], "num_cores", 1) or 1))
    except Exception:
        return 1


def _pick_batch_chunks(B, n_cores):
    # Only split the batch across grid blocks when the chip has >1 TensorCore
    # (v7x megacore); on v5e/v6e the grid is a serial loop and a split only hurts.
    if n_cores >= 2 and B % 2 == 0 and (B // 2) % 8 == 0:
        return 2
    return 1


def _pick_time_chunk(T, b_chunk, H):
    # Size the time-chunk against a v7x-safe VMEM budget (64 MiB per TC): keep the
    # double-buffered streamed blocks + resident recurrent weights under ~40 MiB.
    w_resident = 2 * (4 * H * H * 2)                               # W_hh, 2-deep (bf16)
    state = 2 * (b_chunk * H * 4)                                  # h/c scratch (f32)
    budget = (40 << 20) - w_resident - state
    per_t = 2 * (4 * b_chunk * H * 2) + 2 * (b_chunk * H * 2)      # xg + h_out, 2-deep, bf16
    cap = max(1, min(T, 64, budget // max(per_t, 1)))
    for d in range(int(cap), 0, -1):
        if T % d == 0:
            return d
    return 1


def lstm_regressor_forward(x, params):
    """x: [B, T, D] float32 -> [B, T, output_dim] float32 (nn.LSTM + nn.Linear)."""
    w_ih, w_hh, b_ih, b_hh, w_fc, b_fc = params
    B, T, D = x.shape
    H = w_hh.shape[1]
    lane_fused = (H % 128 == 0)

    n_b = _pick_batch_chunks(B, _num_tensorcores())
    b_chunk = B // n_b
    t_chunk = _pick_time_chunk(T, b_chunk, H)
    n_t = T // t_chunk

    # ---- hoisted input projection: one big matmul outside the serial region ------
    # Only the small (T*B*D) input is transposed to time-major; xg is produced
    # directly in the kernel layout and stored in bf16 (halves the HBM stream).
    x_tm = jnp.transpose(x, (1, 0, 2)).reshape(T * B, D).astype(jnp.bfloat16)
    w_ih_t = jnp.transpose(w_ih).astype(jnp.bfloat16)              # (D, 4H), gates i,f,g,o
    bias = (b_ih + b_hh).astype(jnp.float32)
    xg_flat = jnp.dot(x_tm, w_ih_t, preferred_element_type=jnp.float32) + bias

    if lane_fused:
        xg = xg_flat.astype(jnp.bfloat16).reshape(T, B, 4 * H)          # (T, B, 4H)
        w_hh_k = jnp.transpose(w_hh).astype(jnp.bfloat16)               # (H, 4H)
        xg_spec = pl.BlockSpec((t_chunk, b_chunk, 4 * H), lambda b, t: (t, b, 0))
        w_spec = pl.BlockSpec((H, 4 * H), lambda b, t: (0, 0))
    else:
        xg = (xg_flat.reshape(T, B, 4, H)
              .transpose(0, 2, 1, 3).astype(jnp.bfloat16))              # (T, 4, B, H)
        w_hh_k = jnp.transpose(w_hh.reshape(4, H, H), (0, 2, 1)).astype(jnp.bfloat16)
        xg_spec = pl.BlockSpec((t_chunk, 4, b_chunk, H), lambda b, t: (t, 0, b, 0))
        w_spec = pl.BlockSpec((4, H, H), lambda b, t: (0, 0, 0))
    # NOTE: w_hh's index_map is constant; single-buffering it (pl.Buffered(1)) would
    # reclaim one weight copy of VMEM on v7x but is left at the default for safety.

    # VMEM accounting for the compiler hint (always <= 48 MiB, safe on v7x/v6e/v5e).
    xg_blk = t_chunk * 4 * b_chunk * H * 2
    out_blk = t_chunk * b_chunk * H * 2
    w_bytes = 4 * H * H * 2
    need = 2 * (xg_blk + out_blk + w_bytes) + 2 * b_chunk * H * 4 + (1 << 20)
    vmem_limit = int(min(48 << 20, max(32 << 20, 2 * need)))

    kernel = functools.partial(_lstm_recurrence_kernel, hidden=H, lane_fused=lane_fused)

    # ---- sequential recurrence in Pallas ------------------------------------------
    h_tm = pl.pallas_call(
        kernel,
        out_shape=jax.ShapeDtypeStruct((T, B, H), jnp.bfloat16),
        grid_spec=pltpu.PrefetchScalarGridSpec(
            num_scalar_prefetch=0,
            grid=(n_b, n_t),
            in_specs=[xg_spec, w_spec],
            out_specs=pl.BlockSpec((t_chunk, b_chunk, H), lambda b, t: (t, b, 0)),
            scratch_shapes=[
                pltpu.VMEM((b_chunk, H), jnp.float32),   # h_t
                pltpu.VMEM((b_chunk, H), jnp.float32),   # c_t
            ],
        ),
        compiler_params=pltpu.CompilerParams(
            # batch chunks are independent (megacore on v7x); time is a recurrence.
            dimension_semantics=("parallel", "arbitrary"),
            vmem_limit_bytes=vmem_limit,
        ),
    )(xg, w_hh_k)                                        # (T, B, H) bf16

    # ---- FC head hoisted out of the serial loop: one (T*B,H)x(H,O) matmul; only
    #      the tiny (T,B,O) result is transposed back to batch-first. --------------
    out_tm = jnp.dot(h_tm.reshape(T * B, H).astype(jnp.float32),
                     jnp.transpose(w_fc),
                     preferred_element_type=jnp.float32) + b_fc
    return jnp.transpose(out_tm.reshape(T, B, -1), (1, 0, 2))


def _reference_forward(x, params):
    """Pure-JAX f32 reference matching nn.LSTM(batch_first=True) + nn.Linear."""
    w_ih, w_hh, b_ih, b_hh, w_fc, b_fc = params
    B, T, D = x.shape
    H = w_hh.shape[1]

    def step(carry, x_t):
        h, c = carry
        gates = x_t @ w_ih.T + b_ih + h @ w_hh.T + b_hh
        i = jax.nn.sigmoid(gates[:, 0 * H:1 * H])
        f = jax.nn.sigmoid(gates[:, 1 * H:2 * H])
        g = jnp.tanh(gates[:, 2 * H:3 * H])
        o = jax.nn.sigmoid(gates[:, 3 * H:4 * H])
        c = f * c + i * g
        h = o * jnp.tanh(c)
        return (h, c), h

    h0 = jnp.zeros((B, H), jnp.float32)
    (_, _), hs = jax.lax.scan(step, (h0, h0), jnp.transpose(x, (1, 0, 2)))
    hs = jnp.transpose(hs, (1, 0, 2))                    # (B, T, H)
    return hs @ w_fc.T + b_fc


def init_params(key, input_dim, hidden_dim, output_dim):
    """Deterministic synthetic parameters matching nn.LSTM / nn.Linear shapes."""
    k = jax.random.split(key, 6)
    scale = 0.1
    w_ih = scale * jax.random.normal(k[0], (4 * hidden_dim, input_dim), jnp.float32)
    w_hh = scale * jax.random.normal(k[1], (4 * hidden_dim, hidden_dim), jnp.float32)
    b_ih = scale * jax.random.normal(k[2], (4 * hidden_dim,), jnp.float32)
    b_hh = scale * jax.random.normal(k[3], (4 * hidden_dim,), jnp.float32)
    w_fc = scale * jax.random.normal(k[4], (output_dim, hidden_dim), jnp.float32)
    b_fc = scale * jax.random.normal(k[5], (output_dim,), jnp.float32)
    return (w_ih, w_hh, b_ih, b_hh, w_fc, b_fc)


if __name__ == "__main__":
    B, T, D, H, O = 2, 8, 16, 32, 6
    key = jax.random.PRNGKey(0)
    kx, kp = jax.random.split(key)
    x = jax.random.normal(kx, (B, T, D), jnp.float32)
    params = init_params(kp, D, H, O)

    out = lstm_regressor_forward(x, params)
    jax.block_until_ready(out)
    assert out.shape == (B, T, O), out.shape

    # Sanity check against a pure-JAX f32 reference (bf16 MXU operands and bf16
    # xg/h storage => loose tolerance).
    ref = _reference_forward(x, params)
    max_err = float(jnp.max(jnp.abs(out - ref)))
    assert max_err < 3e-2, f"max abs error vs reference = {max_err}"

    print("KERNEL_OK")
</pallas_src>

<mosaic_0001>
module attributes {stable_mosaic.version = 11 : i64} {
  func.func @_lstm_recurrence_kernel(%arg0: i32, %arg1: i32, %arg2: memref<8x4x2x32xbf16, #tpu.memory_space<vmem>>, %arg3: memref<4x32x32xbf16, #tpu.memory_space<vmem>>, %arg4: memref<8x2x32xbf16, #tpu.memory_space<vmem>>, %arg5: memref<2x32xf32, #tpu.memory_space<vmem>>, %arg6: memref<2x32xf32, #tpu.memory_space<vmem>>) attributes {dimension_semantics = [#tpu.dimension_semantics<parallel>, #tpu.dimension_semantics<arbitrary>], iteration_bounds = array<i64: 1, 1>, scalar_prefetch = 0 : i64, scratch_operands = 2 : i64, tpu.core_type = #tpu.core_type<tc>, window_params = [{transform_indices = @transform_0, window_bounds = array<i64: 8, 4, 2, 32>}, {pipeline_mode = #tpu.pipeline_mode<synchronous>, transform_indices = @transform_1, window_bounds = array<i64: 4, 32, 32>}, {transform_indices = @transform_2, window_bounds = array<i64: 8, 2, 32>}]} {
    %c0_i32 = arith.constant 0 : i32
    %0 = arith.cmpi eq, %arg1, %c0_i32 : i32
    %1 = arith.extui %0 : i1 to i32
    %c0_i32_0 = arith.constant 0 : i32
    %2 = arith.cmpi ne, %1, %c0_i32_0 : i32
    scf.if %2 {
      %cst_217 = arith.constant 0.000000e+00 : f32
      %491 = vector.broadcast %cst_217 : f32 to vector<2x32xf32>
      %c0_218 = arith.constant 0 : index
      %c0_219 = arith.constant 0 : index
      %492 = vector.load %arg5[%c0_218, %c0_219] : memref<2x32xf32, #tpu.memory_space<vmem>>, vector<2x32xf32>
      tpu.vector_store %arg5[%c0_218, %c0_219], %491 {strides = array<i32>} : memref<2x32xf32, #tpu.memory_space<vmem>>, vector<2x32xf32>,
      %cst_220 = arith.constant 0.000000e+00 : f32
      %493 = vector.broadcast %cst_220 : f32 to vector<2x32xf32>
      %c0_221 = arith.constant 0 : index
      %c0_222 = arith.constant 0 : index
      %494 = vector.load %arg6[%c0_221, %c0_222] : memref<2x32xf32, #tpu.memory_space<vmem>>, vector<2x32xf32>
      tpu.vector_store %arg6[%c0_221, %c0_222], %493 {strides = array<i32>} : memref<2x32xf32, #tpu.memory_space<vmem>>, vector<2x32xf32>,
    } else {
    }
    %c0 = arith.constant 0 : index
    %c0_1 = arith.constant 0 : index
    %c0_2 = arith.constant 0 : index
    %3 = vector.load %arg3[%c0, %c0_1, %c0_2] : memref<4x32x32xbf16, #tpu.memory_space<vmem>>, vector<1x32x32xbf16>
    %4 = vector.shape_cast %3 : vector<1x32x32xbf16> to vector<32x32xbf16>
    %c1 = arith.constant 1 : index
    %c0_3 = arith.constant 0 : index
    %c0_4 = arith.constant 0 : index
    %5 = vector.load %arg3[%c1, %c0_3, %c0_4] : memref<4x32x32xbf16, #tpu.memory_space<vmem>>, vector<1x32x32xbf16>
    %6 = vector.shape_cast %5 : vector<1x32x32xbf16> to vector<32x32xbf16>
    %c2 = arith.constant 2 : index
    %c0_5 = arith.constant 0 : index
    %c0_6 = arith.constant 0 : index
    %7 = vector.load %arg3[%c2, %c0_5, %c0_6] : memref<4x32x32xbf16, #tpu.memory_space<vmem>>, vector<1x32x32xbf16>
    %8 = vector.shape_cast %7 : vector<1x32x32xbf16> to vector<32x32xbf16>
    %c3 = arith.constant 3 : index
    %c0_7 = arith.constant 0 : index
    %c0_8 = arith.constant 0 : index
    %9 = vector.load %arg3[%c3, %c0_7, %c0_8] : memref<4x32x32xbf16, #tpu.memory_space<vmem>>, vector<1x32x32xbf16>
    %10 = vector.shape_cast %9 : vector<1x32x32xbf16> to vector<32x32xbf16>
    %c0_i32_9 = arith.constant 0 : i32
    %c0_10 = arith.constant 0 : index
    %c0_11 = arith.constant 0 : index
    %11 = vector.load %arg5[%c0_10, %c0_11] : memref<2x32xf32, #tpu.memory_space<vmem>>, vector<2x32xf32>
    %c0_12 = arith.constant 0 : index
    %c0_13 = arith.constant 0 : index
    %12 = vector.load %arg6[%c0_12, %c0_13] : memref<2x32xf32, #tpu.memory_space<vmem>>, vector<2x32xf32>
    %13 = arith.truncf %11 : vector<2x32xf32> to vector<2x32xbf16>
    %14 = arith.index_cast %c0_i32_9 : i32 to index
    %c0_14 = arith.constant 0 : index
    %c0_15 = arith.constant 0 : index
    %c0_16 = arith.constant 0 : index
    %15 = vector.load %arg2[%14, %c0_14, %c0_15, %c0_16] : memref<8x4x2x32xbf16, #tpu.memory_space<vmem>>, vector<1x4x2x32xbf16>
    %16 = vector.shape_cast %15 : vector<1x4x2x32xbf16> to vector<4x2x32xbf16>
    %17 = vector.extract_strided_slice %16 {offsets = [0, 0, 0], sizes = [1, 2, 32], strides = [1, 1, 1]} : vector<4x2x32xbf16> to vector<1x2x32xbf16>
    %18 = vector.shape_cast %17 : vector<1x2x32xbf16> to vector<2x32xbf16>
    %19 = arith.extf %18 : vector<2x32xbf16> to vector<2x32xf32>
    %cst = arith.constant dense<0.000000e+00> : vector<2x32xf32>
    %20 = tpu.matmul %13, %4, %cst {dimension_numbers = #tpu.dot_dimension_numbers<[1], [0], [0], [1], [0, 0, 1, 1], [], []>} : vector<2x32xbf16>, vector<32x32xbf16>, vector<2x32xf32> -> vector<2x32xf32>
    %21 = arith.addf %19, %20 : vector<2x32xf32>
    %22 = vector.extract_strided_slice %16 {offsets = [1, 0, 0], sizes = [1, 2, 32], strides = [1, 1, 1]} : vector<4x2x32xbf16> to vector<1x2x32xbf16>
    %23 = vector.shape_cast %22 : vector<1x2x32xbf16> to vector<2x32xbf16>
    %24 = arith.extf %23 : vector<2x32xbf16> to vector<2x32xf32>
    %cst_17 = arith.constant dense<0.000000e+00> : vector<2x32xf32>
    %25 = tpu.matmul %13, %6, %cst_17 {dimension_numbers = #tpu.dot_dimension_numbers<[1], [0], [0], [1], [0, 0, 1, 1], [], []>} : vector<2x32xbf16>, vector<32x32xbf16>, vector<2x32xf32> -> vector<2x32xf32>
    %26 = arith.addf %24, %25 : vector<2x32xf32>
    %27 = vector.extract_strided_slice %16 {offsets = [2, 0, 0], sizes = [1, 2, 32], strides = [1, 1, 1]} : vector<4x2x32xbf16> to vector<1x2x32xbf16>
    %28 = vector.shape_cast %27 : vector<1x2x32xbf16> to vector<2x32xbf16>
    %29 = arith.extf %28 : vector<2x32xbf16> to vector<2x32xf32>
    %cst_18 = arith.constant dense<0.000000e+00> : vector<2x32xf32>
    %30 = tpu.matmul %13, %8, %cst_18 {dimension_numbers = #tpu.dot_dimension_numbers<[1], [0], [0], [1], [0, 0, 1, 1], [], []>} : vector<2x32xbf16>, vector<32x32xbf16>, vector<2x32xf32> -> vector<2x32xf32>
    %31 = arith.addf %29, %30 : vector<2x32xf32>
    %32 = vector.extract_strided_slice %16 {offsets = [3, 0, 0], sizes = [1, 2, 32], strides = [1, 1, 1]} : vector<4x2x32xbf16> to vector<1x2x32xbf16>
    %33 = vector.shape_cast %32 : vector<1x2x32xbf16> to vector<2x32xbf16>
    %34 = arith.extf %33 : vector<2x32xbf16> to vector<2x32xf32>
    %cst_19 = arith.constant dense<0.000000e+00> : vector<2x32xf32>
    %35 = tpu.matmul %13, %10, %cst_19 {dimension_numbers = #tpu.dot_dimension_numbers<[1], [0], [0], [1], [0, 0, 1, 1], [], []>} : vector<2x32xbf16>, vector<32x32xbf16>, vector<2x32xf32> -> vector<2x32xf32>
    %36 = arith.addf %34, %35 : vector<2x32xf32>
    %cst_20 = arith.constant 5.000000e-01 : f32
    %37 = vector.broadcast %cst_20 : f32 to vector<2x32xf32>
    %38 = arith.mulf %37, %21 : vector<2x32xf32>
    %39 = math.tanh %38 : vector<2x32xf32>
    %cst_21 = arith.constant 5.000000e-01 : f32
    %40 = vector.broadcast %cst_21 : f32 to vector<2x32xf32>
    %41 = arith.mulf %40, %39 : vector<2x32xf32>
    %cst_22 = arith.constant 5.000000e-01 : f32
    %42 = vector.broadcast %cst_22 : f32 to vector<2x32xf32>
    %43 = arith.addf %41, %42 : vector<2x32xf32>
    %cst_23 = arith.constant 5.000000e-01 : f32
    %44 = vector.broadcast %cst_23 : f32 to vector<2x32xf32>
    %45 = arith.mulf %44, %26 : vector<2x32xf32>
    %46 = math.tanh %45 : vector<2x32xf32>
    %cst_24 = arith.constant 5.000000e-01 : f32
    %47 = vector.broadcast %cst_24 : f32 to vector<2x32xf32>
    %48 = arith.mulf %47, %46 : vector<2x32xf32>
    %cst_25 = arith.constant 5.000000e-01 : f32
    %49 = vector.broadcast %cst_25 : f32 to vector<2x32xf32>
    %50 = arith.addf %48, %49 : vector<2x32xf32>
    %cst_26 = arith.constant 5.000000e-01 : f32
    %51 = vector.broadcast %cst_26 : f32 to vector<2x32xf32>
    %52 = arith.mulf %51, %36 : vector<2x32xf32>
    %53 = math.tanh %52 : vector<2x32xf32>
    %cst_27 = arith.constant 5.000000e-01 : f32
    %54 = vector.broadcast %cst_27 : f32 to vector<2x32xf32>
    %55 = arith.mulf %54, %53 : vector<2x32xf32>
    %cst_28 = arith.constant 5.000000e-01 : f32
    %56 = vector.broadcast %cst_28 : f32 to vector<2x32xf32>
    %57 = arith.addf %55, %56 : vector<2x32xf32>
    %58 = math.tanh %31 : vector<2x32xf32>
    %59 = arith.mulf %50, %12 : vector<2x32xf32>
    %60 = arith.mulf %43, %58 : vector<2x32xf32>
    %61 = arith.addf %59, %60 : vector<2x32xf32>
    %62 = math.tanh %61 : vector<2x32xf32>
    %63 = arith.mulf %57, %62 : vector<2x32xf32>
    %c0_29 = arith.constant 0 : index
    %c0_30 = arith.constant 0 : index
    %64 = vector.load %arg6[%c0_29, %c0_30] : memref<2x32xf32, #tpu.memory_space<vmem>>, vector<2x32xf32>
    tpu.vector_store %arg6[%c0_29, %c0_30], %61 {strides = array<i32>} : memref<2x32xf32, #tpu.memory_space<vmem>>, vector<2x32xf32>,
    %c0_31 = arith.constant 0 : index
    %c0_32 = arith.constant 0 : index
    %65 = vector.load %arg5[%c0_31, %c0_32] : memref<2x32xf32, #tpu.memory_space<vmem>>, vector<2x32xf32>
    tpu.vector_store %arg5[%c0_31, %c0_32], %63 {strides = array<i32>} : memref<2x32xf32, #tpu.memory_space<vmem>>, vector<2x32xf32>,
    %66 = arith.truncf %63 : vector<2x32xf32> to vector<2x32xbf16>
    %67 = arith.index_cast %c0_i32_9 : i32 to index
    %c0_33 = arith.constant 0 : index
    %c0_34 = arith.constant 0 : index
    %68 = vector.load %arg4[%67, %c0_33, %c0_34] : memref<8x2x32xbf16, #tpu.memory_space<vmem>>, vector<1x2x32xbf16>
    %69 = vector.shape_cast %68 : vector<1x2x32xbf16> to vector<2x32xbf16>
    %70 = vector.shape_cast %66 : vector<2x32xbf16> to vector<1x2x32xbf16>
    tpu.vector_store %arg4[%67, %c0_33, %c0_34], %70 {strides = array<i32>} : memref<8x2x32xbf16, #tpu.memory_space<vmem>>, vector<1x2x32xbf16>,
    %c1_i32 = arith.constant 1 : i32
    %c0_35 = arith.constant 0 : index
    %c0_36 = arith.constant 0 : index
    %71 = vector.load %arg5[%c0_35, %c0_36] : memref<2x32xf32, #tpu.memory_space<vmem>>, vector<2x32xf32>
    %c0_37 = arith.constant 0 : index
    %c0_38 = arith.constant 0 : index
    %72 = vector.load %arg6[%c0_37, %c0_38] : memref<2x32xf32, #tpu.memory_space<vmem>>, vector<2x32xf32>
    %73 = arith.truncf %71 : vector<2x32xf32> to vector<2x32xbf16>
    %74 = arith.index_cast %c1_i32 : i32 to index
    %c0_39 = arith.constant 0 : index
    %c0_40 = arith.constant 0 : index
    %c0_41 = arith.constant 0 : index
    %75 = vector.load %arg2[%74, %c0_39, %c0_40, %c0_41] : memref<8x4x2x32xbf16, #tpu.memory_space<vmem>>, vector<1x4x2x32xbf16>
    %76 = vector.shape_cast %75 : vector<1x4x2x32xbf16> to vector<4x2x32xbf16>
    %77 = vector.extract_strided_slice %76 {offsets = [0, 0, 0], sizes = [1, 2, 32], strides = [1, 1, 1]} : vector<4x2x32xbf16> to vector<1x2x32xbf16>
    %78 = vector.shape_cast %77 : vector<1x2x32xbf16> to vector<2x32xbf16>
    %79 = arith.extf %78 : vector<2x32xbf16> to vector<2x32xf32>
    %cst_42 = arith.constant dense<0.000000e+00> : vector<2x32xf32>
    %80 = tpu.matmul %73, %4, %cst_42 {dimension_numbers = #tpu.dot_dimension_numbers<[1], [0], [0], [1], [0, 0, 1, 1], [], []>} : vector<2x32xbf16>, vector<32x32xbf16>, vector<2x32xf32> -> vector<2x32xf32>
    %81 = arith.addf %79, %80 : vector<2x32xf32>
    %82 = vector.extract_strided_slice %76 {offsets = [1, 0, 0], sizes = [1, 2, 32], strides = [1, 1, 1]} : vector<4x2x32xbf16> to vector<1x2x32xbf16>
    %83 = vector.shape_cast %82 : vector<1x2x32xbf16> to vector<2x32xbf16>
    %84 = arith.extf %83 : vector<2x32xbf16> to vector<2x32xf32>
    %cst_43 = arith.constant dense<0.000000e+00> : vector<2x32xf32>
    %85 = tpu.matmul %73, %6, %cst_43 {dimension_numbers = #tpu.dot_dimension_numbers<[1], [0], [0], [1], [0, 0, 1, 1], [], []>} : vector<2x32xbf16>, vector<32x32xbf16>, vector<2x32xf32> -> vector<2x32xf32>
    %86 = arith.addf %84, %85 : vector<2x32xf32>
    %87 = vector.extract_strided_slice %76 {offsets = [2, 0, 0], sizes = [1, 2, 32], strides = [1, 1, 1]} : vector<4x2x32xbf16> to vector<1x2x32xbf16>
    %88 = vector.shape_cast %87 : vector<1x2x32xbf16> to vector<2x32xbf16>
    %89 = arith.extf %88 : vector<2x32xbf16> to vector<2x32xf32>
    %cst_44 = arith.constant dense<0.000000e+00> : vector<2x32xf32>
    %90 = tpu.matmul %73, %8, %cst_44 {dimension_numbers = #tpu.dot_dimension_numbers<[1], [0], [0], [1], [0, 0, 1, 1], [], []>} : vector<2x32xbf16>, vector<32x32xbf16>, vector<2x32xf32> -> vector<2x32xf32>
    %91 = arith.addf %89, %90 : vector<2x32xf32>
    %92 = vector.extract_strided_slice %76 {offsets = [3, 0, 0], sizes = [1, 2, 32], strides = [1, 1, 1]} : vector<4x2x32xbf16> to vector<1x2x32xbf16>
    %93 = vector.shape_cast %92 : vector<1x2x32xbf16> to vector<2x32xbf16>
    %94 = arith.extf %93 : vector<2x32xbf16> to vector<2x32xf32>
    %cst_45 = arith.constant dense<0.000000e+00> : vector<2x32xf32>
    %95 = tpu.matmul %73, %10, %cst_45 {dimension_numbers = #tpu.dot_dimension_numbers<[1], [0], [0], [1], [0, 0, 1, 1], [], []>} : vector<2x32xbf16>, vector<32x32xbf16>, vector<2x32xf32> -> vector<2x32xf32>
    %96 = arith.addf %94, %95 : vector<2x32xf32>
    %cst_46 = arith.constant 5.000000e-01 : f32
    %97 = vector.broadcast %cst_46 : f32 to vector<2x32xf32>
    %98 = arith.mulf %97, %81 : vector<2x32xf32>
    %99 = math.tanh %98 : vector<2x32xf32>
    %cst_47 = arith.constant 5.000000e-01 : f32
    %100 = vector.broadcast %cst_47 : f32 to vector<2x32xf32>
    %101 = arith.mulf %100, %99 : vector<2x32xf32>
    %cst_48 = arith.constant 5.000000e-01 : f32
    %102 = vector.broadcast %cst_48 : f32 to vector<2x32xf32>
    %103 = arith.addf %101, %102 : vector<2x32xf32>
    %cst_49 = arith.constant 5.000000e-01 : f32
    %104 = vector.broadcast %cst_49 : f32 to vector<2x32xf32>
    %105 = arith.mulf %104, %86 : vector<2x32xf32>
    %106 = math.tanh %105 : vector<2x32xf32>
    %cst_50 = arith.constant 5.000000e-01 : f32
    %107 = vector.broadcast %cst_50 : f32 to vector<2x32xf32>
    %108 = arith.mulf %107, %106 : vector<2x32xf32>
    %cst_51 = arith.constant 5.000000e-01 : f32
    %109 = vector.broadcast %cst_51 : f32 to vector<2x32xf32>
    %110 = arith.addf %108, %109 : vector<2x32xf32>
    %cst_52 = arith.constant 5.000000e-01 : f32
    %111 = vector.broadcast %cst_52 : f32 to vector<2x32xf32>
    %112 = arith.mulf %111, %96 : vector<2x32xf32>
    %113 = math.tanh %112 : vector<2x32xf32>
    %cst_53 = arith.constant 5.000000e-01 : f32
    %114 = vector.broadcast %cst_53 : f32 to vector<2x32xf32>
    %115 = arith.mulf %114, %113 : vector<2x32xf32>
    %cst_54 = arith.constant 5.000000e-01 : f32
    %116 = vector.broadcast %cst_54 : f32 to vector<2x32xf32>
    %117 = arith.addf %115, %116 : vector<2x32xf32>
    %118 = math.tanh %91 : vector<2x32xf32>
    %119 = arith.mulf %110, %72 : vector<2x32xf32>
    %120 = arith.mulf %103, %118 : vector<2x32xf32>
    %121 = arith.addf %119, %120 : vector<2x32xf32>
    %122 = math.tanh %121 : vector<2x32xf32>
    %123 = arith.mulf %117, %122 : vector<2x32xf32>
    %c0_55 = arith.constant 0 : index
    %c0_56 = arith.constant 0 : index
    %124 = vector.load %arg6[%c0_55, %c0_56] : memref<2x32xf32, #tpu.memory_space<vmem>>, vector<2x32xf32>
    tpu.vector_store %arg6[%c0_55, %c0_56], %121 {strides = array<i32>} : memref<2x32xf32, #tpu.memory_space<vmem>>, vector<2x32xf32>,
    %c0_57 = arith.constant 0 : index
    %c0_58 = arith.constant 0 : index
    %125 = vector.load %arg5[%c0_57, %c0_58] : memref<2x32xf32, #tpu.memory_space<vmem>>, vector<2x32xf32>
    tpu.vector_store %arg5[%c0_57, %c0_58], %123 {strides = array<i32>} : memref<2x32xf32, #tpu.memory_space<vmem>>, vector<2x32xf32>,
    %126 = arith.truncf %123 : vector<2x32xf32> to vector<2x32xbf16>
    %127 = arith.index_cast %c1_i32 : i32 to index
    %c0_59 = arith.constant 0 : index
    %c0_60 = arith.constant 0 : index
    %128 = vector.load %arg4[%127, %c0_59, %c0_60] : memref<8x2x32xbf16, #tpu.memory_space<vmem>>, vector<1x2x32xbf16>
    %129 = vector.shape_cast %128 : vector<1x2x32xbf16> to vector<2x32xbf16>
    %130 = vector.shape_cast %126 : vector<2x32xbf16> to vector<1x2x32xbf16>
    tpu.vector_store %arg4[%127, %c0_59, %c0_60], %130 {strides = array<i32>} : memref<8x2x32xbf16, #tpu.memory_space<vmem>>, vector<1x2x32xbf16>,
    %c2_i32 = arith.constant 2 : i32
    %c0_61 = arith.constant 0 : index
    %c0_62 = arith.constant 0 : index
    %131 = vector.load %arg5[%c0_61, %c0_62] : memref<2x32xf32, #tpu.memory_space<vmem>>, vector<2x32xf32>
    %c0_63 = arith.constant 0 : index
    %c0_64 = arith.constant 0 : index
    %132 = vector.load %arg6[%c0_63, %c0_64] : memref<2x32xf32, #tpu.memory_space<vmem>>, vector<2x32xf32>
    %133 = arith.truncf %131 : vector<2x32xf32> to vector<2x32xbf16>
    %134 = arith.index_cast %c2_i32 : i32 to index
    %c0_65 = arith.constant 0 : index
    %c0_66 = arith.constant 0 : index
    %c0_67 = arith.constant 0 : index
    %135 = vector.load %arg2[%134, %c0_65, %c0_66, %c0_67] : memref<8x4x2x32xbf16, #tpu.memory_space<vmem>>, vector<1x4x2x32xbf16>
    %136 = vector.shape_cast %135 : vector<1x4x2x32xbf16> to vector<4x2x32xbf16>
    %137 = vector.extract_strided_slice %136 {offsets = [0, 0, 0], sizes = [1, 2, 32], strides = [1, 1, 1]} : vector<4x2x32xbf16> to vector<1x2x32xbf16>
    %138 = vector.shape_cast %137 : vector<1x2x32xbf16> to vector<2x32xbf16>
    %139 = arith.extf %138 : vector<2x32xbf16> to vector<2x32xf32>
    %cst_68 = arith.constant dense<0.000000e+00> : vector<2x32xf32>
    %140 = tpu.matmul %133, %4, %cst_68 {dimension_numbers = #tpu.dot_dimension_numbers<[1], [0], [0], [1], [0, 0, 1, 1], [], []>} : vector<2x32xbf16>, vector<32x32xbf16>, vector<2x32xf32> -> vector<2x32xf32>
    %141 = arith.addf %139, %140 : vector<2x32xf32>
    %142 = vector.extract_strided_slice %136 {offsets = [1, 0, 0], sizes = [1, 2, 32], strides = [1, 1, 1]} : vector<4x2x32xbf16> to vector<1x2x32xbf16>
    %143 = vector.shape_cast %142 : vector<1x2x32xbf16> to vector<2x32xbf16>
    %144 = arith.extf %143 : vector<2x32xbf16> to vector<2x32xf32>
    %cst_69 = arith.constant dense<0.000000e+00> : vector<2x32xf32>
    %145 = tpu.matmul %133, %6, %cst_69 {dimension_numbers = #tpu.dot_dimension_numbers<[1], [0], [0], [1], [0, 0, 1, 1], [], []>} : vector<2x32xbf16>, vector<32x32xbf16>, vector<2x32xf32> -> vector<2x32xf32>
    %146 = arith.addf %144, %145 : vector<2x32xf32>
    %147 = vector.extract_strided_slice %136 {offsets = [2, 0, 0], sizes = [1, 2, 32], strides = [1, 1, 1]} : vector<4x2x32xbf16> to vector<1x2x32xbf16>
    %148 = vector.shape_cast %147 : vector<1x2x32xbf16> to vector<2x32xbf16>
    %149 = arith.extf %148 : vector<2x32xbf16> to vector<2x32xf32>
    %cst_70 = arith.constant dense<0.000000e+00> : vector<2x32xf32>
    %150 = tpu.matmul %133, %8, %cst_70 {dimension_numbers = #tpu.dot_dimension_numbers<[1], [0], [0], [1], [0, 0, 1, 1], [], []>} : vector<2x32xbf16>, vector<32x32xbf16>, vector<2x32xf32> -> vector<2x32xf32>
    %151 = arith.addf %149, %150 : vector<2x32xf32>
    %152 = vector.extract_strided_slice %136 {offsets = [3, 0, 0], sizes = [1, 2, 32], strides = [1, 1, 1]} : vector<4x2x32xbf16> to vector<1x2x32xbf16>
    %153 = vector.shape_cast %152 : vector<1x2x32xbf16> to vector<2x32xbf16>
    %154 = arith.extf %153 : vector<2x32xbf16> to vector<2x32xf32>
    %cst_71 = arith.constant dense<0.000000e+00> : vector<2x32xf32>
    %155 = tpu.matmul %133, %10, %cst_71 {dimension_numbers = #tpu.dot_dimension_numbers<[1], [0], [0], [1], [0, 0, 1, 1], [], []>} : vector<2x32xbf16>, vector<32x32xbf16>, vector<2x32xf32> -> vector<2x32xf32>
    %156 = arith.addf %154, %155 : vector<2x32xf32>
    %cst_72 = arith.constant 5.000000e-01 : f32
    %157 = vector.broadcast %cst_72 : f32 to vector<2x32xf32>
    %158 = arith.mulf %157, %141 : vector<2x32xf32>
    %159 = math.tanh %158 : vector<2x32xf32>
    %cst_73 = arith.constant 5.000000e-01 : f32
    %160 = vector.broadcast %cst_73 : f32 to vector<2x32xf32>
    %161 = arith.mulf %160, %159 : vector<2x32xf32>
    %cst_74 = arith.constant 5.000000e-01 : f32
    %162 = vector.broadcast %cst_74 : f32 to vector<2x32xf32>
    %163 = arith.addf %161, %162 : vector<2x32xf32>
    %cst_75 = arith.constant 5.000000e-01 : f32
    %164 = vector.broadcast %cst_75 : f32 to vector<2x32xf32>
    %165 = arith.mulf %164, %146 : vector<2x32xf32>
    %166 = math.tanh %165 : vector<2x32xf32>
    %cst_76 = arith.constant 5.000000e-01 : f32
    %167 = vector.broadcast %cst_76 : f32 to vector<2x32xf32>
    %168 = arith.mulf %167, %166 : vector<2x32xf32>
    %cst_77 = arith.constant 5.000000e-01 : f32
    %169 = vector.broadcast %cst_77 : f32 to vector<2x32xf32>
    %170 = arith.addf %168, %169 : vector<2x32xf32>
    %cst_78 = arith.constant 5.000000e-01 : f32
    %171 = vector.broadcast %cst_78 : f32 to vector<2x32xf32>
    %172 = arith.mulf %171, %156 : vector<2x32xf32>
    %173 = math.tanh %172 : vector<2x32xf32>
    %cst_79 = arith.constant 5.000000e-01 : f32
    %174 = vector.broadcast %cst_79 : f32 to vector<2x32xf32>
    %175 = arith.mulf %174, %173 : vector<2x32xf32>
    %cst_80 = arith.constant 5.000000e-01 : f32
    %176 = vector.broadcast %cst_80 : f32 to vector<2x32xf32>
    %177 = arith.addf %175, %176 : vector<2x32xf32>
    %178 = math.tanh %151 : vector<2x32xf32>
    %179 = arith.mulf %170, %132 : vector<2x32xf32>
    %180 = arith.mulf %163, %178 : vector<2x32xf32>
    %181 = arith.addf %179, %180 : vector<2x32xf32>
    %182 = math.tanh %181 : vector<2x32xf32>
    %183 = arith.mulf %177, %182 : vector<2x32xf32>
    %c0_81 = arith.constant 0 : index
    %c0_82 = arith.constant 0 : index
    %184 = vector.load %arg6[%c0_81, %c0_82] : memref<2x32xf32, #tpu.memory_space<vmem>>, vector<2x32xf32>
    tpu.vector_store %arg6[%c0_81, %c0_82], %181 {strides = array<i32>} : memref<2x32xf32, #tpu.memory_space<vmem>>, vector<2x32xf32>,
    %c0_83 = arith.constant 0 : index
    %c0_84 = arith.constant 0 : index
    %185 = vector.load %arg5[%c0_83, %c0_84] : memref<2x32xf32, #tpu.memory_space<vmem>>, vector<2x32xf32>
    tpu.vector_store %arg5[%c0_83, %c0_84], %183 {strides = array<i32>} : memref<2x32xf32, #tpu.memory_space<vmem>>, vector<2x32xf32>,
    %186 = arith.truncf %183 : vector<2x32xf32> to vector<2x32xbf16>
    %187 = arith.index_cast %c2_i32 : i32 to index
    %c0_85 = arith.constant 0 : index
    %c0_86 = arith.constant 0 : index
    %188 = vector.load %arg4[%187, %c0_85, %c0_86] : memref<8x2x32xbf16, #tpu.memory_space<vmem>>, vector<1x2x32xbf16>
    %189 = vector.shape_cast %188 : vector<1x2x32xbf16> to vector<2x32xbf16>
    %190 = vector.shape_cast %186 : vector<2x32xbf16> to vector<1x2x32xbf16>
    tpu.vector_store %arg4[%187, %c0_85, %c0_86], %190 {strides = array<i32>} : memref<8x2x32xbf16, #tpu.memory_space<vmem>>, vector<1x2x32xbf16>,
    %c3_i32 = arith.constant 3 : i32
    %c0_87 = arith.constant 0 : index
    %c0_88 = arith.constant 0 : index
    %191 = vector.load %arg5[%c0_87, %c0_88] : memref<2x32xf32, #tpu.memory_space<vmem>>, vector<2x32xf32>
    %c0_89 = arith.constant 0 : index
    %c0_90 = arith.constant 0 : index
    %192 = vector.load %arg6[%c0_89, %c0_90] : memref<2x32xf32, #tpu.memory_space<vmem>>, vector<2x32xf32>
    %193 = arith.truncf %191 : vector<2x32xf32> to vector<2x32xbf16>
    %194 = arith.index_cast %c3_i32 : i32 to index
    %c0_91 = arith.constant 0 : index
    %c0_92 = arith.constant 0 : index
    %c0_93 = arith.constant 0 : index
    %195 = vector.load %arg2[%194, %c0_91, %c0_92, %c0_93] : memref<8x4x2x32xbf16, #tpu.memory_space<vmem>>, vector<1x4x2x32xbf16>
    %196 = vector.shape_cast %195 : vector<1x4x2x32xbf16> to vector<4x2x32xbf16>
    %197 = vector.extract_strided_slice %196 {offsets = [0, 0, 0], sizes = [1, 2, 32], strides = [1, 1, 1]} : vector<4x2x32xbf16> to vector<1x2x32xbf16>
    %198 = vector.shape_cast %197 : vector<1x2x32xbf16> to vector<2x32xbf16>
    %199 = arith.extf %198 : vector<2x32xbf16> to vector<2x32xf32>
    %cst_94 = arith.constant dense<0.000000e+00> : vector<2x32xf32>
    %200 = tpu.matmul %193, %4, %cst_94 {dimension_numbers = #tpu.dot_dimension_numbers<[1], [0], [0], [1], [0, 0, 1, 1], [], []>} : vector<2x32xbf16>, vector<32x32xbf16>, vector<2x32xf32> -> vector<2x32xf32>
    %201 = arith.addf %199, %200 : vector<2x32xf32>
    %202 = vector.extract_strided_slice %196 {offsets = [1, 0, 0], sizes = [1, 2, 32], strides = [1, 1, 1]} : vector<4x2x32xbf16> to vector<1x2x32xbf16>
    %203 = vector.shape_cast %202 : vector<1x2x32xbf16> to vector<2x32xbf16>
    %204 = arith.extf %203 : vector<2x32xbf16> to vector<2x32xf32>
    %cst_95 = arith.constant dense<0.000000e+00> : vector<2x32xf32>
    %205 = tpu.matmul %193, %6, %cst_95 {dimension_numbers = #tpu.dot_dimension_numbers<[1], [0], [0], [1], [0, 0, 1, 1], [], []>} : vector<2x32xbf16>, vector<32x32xbf16>, vector<2x32xf32> -> vector<2x32xf32>
    %206 = arith.addf %204, %205 : vector<2x32xf32>
    %207 = vector.extract_strided_slice %196 {offsets = [2, 0, 0], sizes = [1, 2, 32], strides = [1, 1, 1]} : vector<4x2x32xbf16> to vector<1x2x32xbf16>
    %208 = vector.shape_cast %207 : vector<1x2x32xbf16> to vector<2x32xbf16>
    %209 = arith.extf %208 : vector<2x32xbf16> to vector<2x32xf32>
    %cst_96 = arith.constant dense<0.000000e+00> : vector<2x32xf32>
    %210 = tpu.matmul %193, %8, %cst_96 {dimension_numbers = #tpu.dot_dimension_numbers<[1], [0], [0], [1], [0, 0, 1, 1], [], []>} : vector<2x32xbf16>, vector<32x32xbf16>, vector<2x32xf32> -> vector<2x32xf32>
    %211 = arith.addf %209, %210 : vector<2x32xf32>
    %212 = vector.extract_strided_slice %196 {offsets = [3, 0, 0], sizes = [1, 2, 32], strides = [1, 1, 1]} : vector<4x2x32xbf16> to vector<1x2x32xbf16>
    %213 = vector.shape_cast %212 : vector<1x2x32xbf16> to vector<2x32xbf16>
    %214 = arith.extf %213 : vector<2x32xbf16> to vector<2x32xf32>
    %cst_97 = arith.constant dense<0.000000e+00> : vector<2x32xf32>
    %215 = tpu.matmul %193, %10, %cst_97 {dimension_numbers = #tpu.dot_dimension_numbers<[1], [0], [0], [1], [0, 0, 1, 1], [], []>} : vector<2x32xbf16>, vector<32x32xbf16>, vector<2x32xf32> -> vector<2x32xf32>
    %216 = arith.addf %214, %215 : vector<2x32xf32>
    %cst_98 = arith.constant 5.000000e-01 : f32
    %217 = vector.broadcast %cst_98 : f32 to vector<2x32xf32>
    %218 = arith.mulf %217, %201 : vector<2x32xf32>
    %219 = math.tanh %218 : vector<2x32xf32>
    %cst_99 = arith.constant 5.000000e-01 : f32
    %220 = vector.broadcast %cst_99 : f32 to vector<2x32xf32>
    %221 = arith.mulf %220, %219 : vector<2x32xf32>
    %cst_100 = arith.constant 5.000000e-01 : f32
    %222 = vector.broadcast %cst_100 : f32 to vector<2x32xf32>
    %223 = arith.addf %221, %222 : vector<2x32xf32>
    %cst_101 = arith.constant 5.000000e-01 : f32
    %224 = vector.broadcast %cst_101 : f32 to vector<2x32xf32>
    %225 = arith.mulf %224, %206 : vector<2x32xf32>
    %226 = math.tanh %225 : vector<2x32xf32>
    %cst_102 = arith.constant 5.000000e-01 : f32
    %227 = vector.broadcast %cst_102 : f32 to vector<2x32xf32>
    %228 = arith.mulf %227, %226 : vector<2x32xf32>
    %cst_103 = arith.constant 5.000000e-01 : f32
    %229 = vector.broadcast %cst_103 : f32 to vector<2x32xf32>
    %230 = arith.addf %228, %229 : vector<2x32xf32>
    %cst_104 = arith.constant 5.000000e-01 : f32
    %231 = vector.broadcast %cst_104 : f32 to vector<2x32xf32>
    %232 = arith.mulf %231, %216 : vector<2x32xf32>
    %233 = math.tanh %232 : vector<2x32xf32>
    %cst_105 = arith.constant 5.000000e-01 : f32
    %234 = vector.broadcast %cst_105 : f32 to vector<2x32xf32>
    %235 = arith.mulf %234, %233 : vector<2x32xf32>
    %cst_106 = arith.constant 5.000000e-01 : f32
    %236 = vector.broadcast %cst_106 : f32 to vector<2x32xf32>
    %237 = arith.addf %235, %236 : vector<2x32xf32>
    %238 = math.tanh %211 : vector<2x32xf32>
    %239 = arith.mulf %230, %192 : vector<2x32xf32>
    %240 = arith.mulf %223, %238 : vector<2x32xf32>
    %241 = arith.addf %239, %240 : vector<2x32xf32>
    %242 = math.tanh %241 : vector<2x32xf32>
    %243 = arith.mulf %237, %242 : vector<2x32xf32>
    %c0_107 = arith.constant 0 : index
    %c0_108 = arith.constant 0 : index
    %244 = vector.load %arg6[%c0_107, %c0_108] : memref<2x32xf32, #tpu.memory_space<vmem>>, vector<2x32xf32>
    tpu.vector_store %arg6[%c0_107, %c0_108], %241 {strides = array<i32>} : memref<2x32xf32, #tpu.memory_space<vmem>>, vector<2x32xf32>,
    %c0_109 = arith.constant 0 : index
    %c0_110 = arith.constant 0 : index
    %245 = vector.load %arg5[%c0_109, %c0_110] : memref<2x32xf32, #tpu.memory_space<vmem>>, vector<2x32xf32>
    tpu.vector_store %arg5[%c0_109, %c0_110], %243 {strides = array<i32>} : memref<2x32xf32, #tpu.memory_space<vmem>>, vector<2x32xf32>,
    %246 = arith.truncf %243 : vector<2x32xf32> to vector<2x32xbf16>
    %247 = arith.index_cast %c3_i32 : i32 to index
    %c0_111 = arith.constant 0 : index
    %c0_112 = arith.constant 0 : index
    %248 = vector.load %arg4[%247, %c0_111, %c0_112] : memref<8x2x32xbf16, #tpu.memory_space<vmem>>, vector<1x2x32xbf16>
    %249 = vector.shape_cast %248 : vector<1x2x32xbf16> to vector<2x32xbf16>
    %250 = vector.shape_cast %246 : vector<2x32xbf16> to vector<1x2x32xbf16>
    tpu.vector_store %arg4[%247, %c0_111, %c0_112], %250 {strides = array<i32>} : memref<8x2x32xbf16, #tpu.memory_space<vmem>>, vector<1x2x32xbf16>,
    %c4_i32 = arith.constant 4 : i32
    %c0_113 = arith.constant 0 : index
    %c0_114 = arith.constant 0 : index
    %251 = vector.load %arg5[%c0_113, %c0_114] : memref<2x32xf32, #tpu.memory_space<vmem>>, vector<2x32xf32>
    %c0_115 = arith.constant 0 : index
    %c0_116 = arith.constant 0 : index
    %252 = vector.load %arg6[%c0_115, %c0_116] : memref<2x32xf32, #tpu.memory_space<vmem>>, vector<2x32xf32>
    %253 = arith.truncf %251 : vector<2x32xf32> to vector<2x32xbf16>
    %254 = arith.index_cast %c4_i32 : i32 to index
    %c0_117 = arith.constant 0 : index
    %c0_118 = arith.constant 0 : index
    %c0_119 = arith.constant 0 : index
    %255 = vector.load %arg2[%254, %c0_117, %c0_118, %c0_119] : memref<8x4x2x32xbf16, #tpu.memory_space<vmem>>, vector<1x4x2x32xbf16>
    %256 = vector.shape_cast %255 : vector<1x4x2x32xbf16> to vector<4x2x32xbf16>
    %257 = vector.extract_strided_slice %256 {offsets = [0, 0, 0], sizes = [1, 2, 32], strides = [1, 1, 1]} : vector<4x2x32xbf16> to vector<1x2x32xbf16>
    %258 = vector.shape_cast %257 : vector<1x2x32xbf16> to vector<2x32xbf16>
    %259 = arith.extf %258 : vector<2x32xbf16> to vector<2x32xf32>
    %cst_120 = arith.constant dense<0.000000e+00> : vector<2x32xf32>
    %260 = tpu.matmul %253, %4, %cst_120 {dimension_numbers = #tpu.dot_dimension_numbers<[1], [0], [0], [1], [0, 0, 1, 1], [], []>} : vector<2x32xbf16>, vector<32x32xbf16>, vector<2x32xf32> -> vector<2x32xf32>
    %261 = arith.addf %259, %260 : vector<2x32xf32>
    %262 = vector.extract_strided_slice %256 {offsets = [1, 0, 0], sizes = [1, 2, 32], strides = [1, 1, 1]} : vector<4x2x32xbf16> to vector<1x2x32xbf16>
    %263 = vector.shape_cast %262 : vector<1x2x32xbf16> to vector<2x32xbf16>
    %264 = arith.extf %263 : vector<2x32xbf16> to vector<2x32xf32>
    %cst_121 = arith.constant dense<0.000000e+00> : vector<2x32xf32>
    %265 = tpu.matmul %253, %6, %cst_121 {dimension_numbers = #tpu.dot_dimension_numbers<[1], [0], [0], [1], [0, 0, 1, 1], [], []>} : vector<2x32xbf16>, vector<32x32xbf16>, vector<2x32xf32> -> vector<2x32xf32>
    %266 = arith.addf %264, %265 : vector<2x32xf32>
    %267 = vector.extract_strided_slice %256 {offsets = [2, 0, 0], sizes = [1, 2, 32], strides = [1, 1, 1]} : vector<4x2x32xbf16> to vector<1x2x32xbf16>
    %268 = vector.shape_cast %267 : vector<1x2x32xbf16> to vector<2x32xbf16>
    %269 = arith.extf %268 : vector<2x32xbf16> to vector<2x32xf32>
    %cst_122 = arith.constant dense<0.000000e+00> : vector<2x32xf32>
    %270 = tpu.matmul %253, %8, %cst_122 {dimension_numbers = #tpu.dot_dimension_numbers<[1], [0], [0], [1], [0, 0, 1, 1], [], []>} : vector<2x32xbf16>, vector<32x32xbf16>, vector<2x32xf32> -> vector<2x32xf32>
    %271 = arith.addf %269, %270 : vector<2x32xf32>
    %272 = vector.extract_strided_slice %256 {offsets = [3, 0, 0], sizes = [1, 2, 32], strides = [1, 1, 1]} : vector<4x2x32xbf16> to vector<1x2x32xbf16>
    %273 = vector.shape_cast %272 : vector<1x2x32xbf16> to vector<2x32xbf16>
    %274 = arith.extf %273 : vector<2x32xbf16> to vector<2x32xf32>
    %cst_123 = arith.constant dense<0.000000e+00> : vector<2x32xf32>
    %275 = tpu.matmul %253, %10, %cst_123 {dimension_numbers = #tpu.dot_dimension_numbers<[1], [0], [0], [1], [0, 0, 1, 1], [], []>} : vector<2x32xbf16>, vector<32x32xbf16>, vector<2x32xf32> -> vector<2x32xf32>
    %276 = arith.addf %274, %275 : vector<2x32xf32>
    %cst_124 = arith.constant 5.000000e-01 : f32
    %277 = vector.broadcast %cst_124 : f32 to vector<2x32xf32>
    %278 = arith.mulf %277, %261 : vector<2x32xf32>
    %279 = math.tanh %278 : vector<2x32xf32>
    %cst_125 = arith.constant 5.000000e-01 : f32
    %280 = vector.broadcast %cst_125 : f32 to vector<2x32xf32>
    %281 = arith.mulf %280, %279 : vector<2x32xf32>
    %cst_126 = arith.constant 5.000000e-01 : f32
    %282 = vector.broadcast %cst_126 : f32 to vector<2x32xf32>
    %283 = arith.addf %281, %282 : vector<2x32xf32>
    %cst_127 = arith.constant 5.000000e-01 : f32
    %284 = vector.broadcast %cst_127 : f32 to vector<2x32xf32>
    %285 = arith.mulf %284, %266 : vector<2x32xf32>
    %286 = math.tanh %285 : vector<2x32xf32>
    %cst_128 = arith.constant 5.000000e-01 : f32
    %287 = vector.broadcast %cst_128 : f32 to vector<2x32xf32>
    %288 = arith.mulf %287, %286 : vector<2x32xf32>
    %cst_129 = arith.constant 5.000000e-01 : f32
    %289 = vector.broadcast %cst_129 : f32 to vector<2x32xf32>
    %290 = arith.addf %288, %289 : vector<2x32xf32>
    %cst_130 = arith.constant 5.000000e-01 : f32
    %291 = vector.broadcast %cst_130 : f32 to vector<2x32xf32>
    %292 = arith.mulf %291, %276 : vector<2x32xf32>
    %293 = math.tanh %292 : vector<2x32xf32>
    %cst_131 = arith.constant 5.000000e-01 : f32
    %294 = vector.broadcast %cst_131 : f32 to vector<2x32xf32>
    %295 = arith.mulf %294, %293 : vector<2x32xf32>
    %cst_132 = arith.constant 5.000000e-01 : f32
    %296 = vector.broadcast %cst_132 : f32 to vector<2x32xf32>
    %297 = arith.addf %295, %296 : vector<2x32xf32>
    %298 = math.tanh %271 : vector<2x32xf32>
    %299 = arith.mulf %290, %252 : vector<2x32xf32>
    %300 = arith.mulf %283, %298 : vector<2x32xf32>
    %301 = arith.addf %299, %300 : vector<2x32xf32>
    %302 = math.tanh %301 : vector<2x32xf32>
    %303 = arith.mulf %297, %302 : vector<2x32xf32>
    %c0_133 = arith.constant 0 : index
    %c0_134 = arith.constant 0 : index
    %304 = vector.load %arg6[%c0_133, %c0_134] : memref<2x32xf32, #tpu.memory_space<vmem>>, vector<2x32xf32>
    tpu.vector_store %arg6[%c0_133, %c0_134], %301 {strides = array<i32>} : memref<2x32xf32, #tpu.memory_space<vmem>>, vector<2x32xf32>,
    %c0_135 = arith.constant 0 : index
    %c0_136 = arith.constant 0 : index
    %305 = vector.load %arg5[%c0_135, %c0_136] : memref<2x32xf32, #tpu.memory_space<vmem>>, vector<2x32xf32>
    tpu.vector_store %arg5[%c0_135, %c0_136], %303 {strides = array<i32>} : memref<2x32xf32, #tpu.memory_space<vmem>>, vector<2x32xf32>,
    %306 = arith.truncf %303 : vector<2x32xf32> to vector<2x32xbf16>
    %307 = arith.index_cast %c4_i32 : i32 to index
    %c0_137 = arith.constant 0 : index
    %c0_138 = arith.constant 0 : index
    %308 = vector.load %arg4[%307, %c0_137, %c0_138] : memref<8x2x32xbf16, #tpu.memory_space<vmem>>, vector<1x2x32xbf16>
    %309 = vector.shape_cast %308 : vector<1x2x32xbf16> to vector<2x32xbf16>
    %310 = vector.shape_cast %306 : vector<2x32xbf16> to vector<1x2x32xbf16>
    tpu.vector_store %arg4[%307, %c0_137, %c0_138], %310 {strides = array<i32>} : memref<8x2x32xbf16, #tpu.memory_space<vmem>>, vector<1x2x32xbf16>,
    %c5_i32 = arith.constant 5 : i32
    %c0_139 = arith.constant 0 : index
    %c0_140 = arith.constant 0 : index
    %311 = vector.load %arg5[%c0_139, %c0_140] : memref<2x32xf32, #tpu.memory_space<vmem>>, vector<2x32xf32>
    %c0_141 = arith.constant 0 : index
    %c0_142 = arith.constant 0 : index
    %312 = vector.load %arg6[%c0_141, %c0_142] : memref<2x32xf32, #tpu.memory_space<vmem>>, vector<2x32xf32>
    %313 = arith.truncf %311 : vector<2x32xf32> to vector<2x32xbf16>
    %314 = arith.index_cast %c5_i32 : i32 to index
    %c0_143 = arith.constant 0 : index
    %c0_144 = arith.constant 0 : index
    %c0_145 = arith.constant 0 : index
    %315 = vector.load %arg2[%314, %c0_143, %c0_144, %c0_145] : memref<8x4x2x32xbf16, #tpu.memory_space<vmem>>, vector<1x4x2x32xbf16>
    %316 = vector.shape_cast %315 : vector<1x4x2x32xbf16> to vector<4x2x32xbf16>
    %317 = vector.extract_strided_slice %316 {offsets = [0, 0, 0], sizes = [1, 2, 32], strides = [1, 1, 1]} : vector<4x2x32xbf16> to vector<1x2x32xbf16>
    %318 = vector.shape_cast %317 : vector<1x2x32xbf16> to vector<2x32xbf16>
    %319 = arith.extf %318 : vector<2x32xbf16> to vector<2x32xf32>
    %cst_146 = arith.constant dense<0.000000e+00> : vector<2x32xf32>
    %320 = tpu.matmul %313, %4, %cst_146 {dimension_numbers = #tpu.dot_dimension_numbers<[1], [0], [0], [1], [0, 0, 1, 1], [], []>} : vector<2x32xbf16>, vector<32x32xbf16>, vector<2x32xf32> -> vector<2x32xf32>
    %321 = arith.addf %319, %320 : vector<2x32xf32>
    %322 = vector.extract_strided_slice %316 {offsets = [1, 0, 0], sizes = [1, 2, 32], strides = [1, 1, 1]} : vector<4x2x32xbf16> to vector<1x2x32xbf16>
    %323 = vector.shape_cast %322 : vector<1x2x32xbf16> to vector<2x32xbf16>
    %324 = arith.extf %323 : vector<2x32xbf16> to vector<2x32xf32>
    %cst_147 = arith.constant dense<0.000000e+00> : vector<2x32xf32>
    %325 = tpu.matmul %313, %6, %cst_147 {dimension_numbers = #tpu.dot_dimension_numbers<[1], [0], [0], [1], [0, 0, 1, 1], [], []>} : vector<2x32xbf16>, vector<32x32xbf16>, vector<2x32xf32> -> vector<2x32xf32>
    %326 = arith.addf %324, %325 : vector<2x32xf32>
    %327 = vector.extract_strided_slice %316 {offsets = [2, 0, 0], sizes = [1, 2, 32], strides = [1, 1, 1]} : vector<4x2x32xbf16> to vector<1x2x32xbf16>
    %328 = vector.shape_cast %327 : vector<1x2x32xbf16> to vector<2x32xbf16>
    %329 = arith.extf %328 : vector<2x32xbf16> to vector<2x32xf32>
    %cst_148 = arith.constant dense<0.000000e+00> : vector<2x32xf32>
    %330 = tpu.matmul %313, %8, %cst_148 {dimension_numbers = #tpu.dot_dimension_numbers<[1], [0], [0], [1], [0, 0, 1, 1], [], []>} : vector<2x32xbf16>, vector<32x32xbf16>, vector<2x32xf32> -> vector<2x32xf32>
    %331 = arith.addf %329, %330 : vector<2x32xf32>
    %332 = vector.extract_strided_slice %316 {offsets = [3, 0, 0], sizes = [1, 2, 32], strides = [1, 1, 1]} : vector<4x2x32xbf16> to vector<1x2x32xbf16>
    %333 = vector.shape_cast %332 : vector<1x2x32xbf16> to vector<2x32xbf16>
    %334 = arith.extf %333 : vector<2x32xbf16> to vector<2x32xf32>
    %cst_149 = arith.constant dense<0.000000e+00> : vector<2x32xf32>
    %335 = tpu.matmul %313, %10, %cst_149 {dimension_numbers = #tpu.dot_dimension_numbers<[1], [0], [0], [1], [0, 0, 1, 1], [], []>} : vector<2x32xbf16>, vector<32x32xbf16>, vector<2x32xf32> -> vector<2x32xf32>
    %336 = arith.addf %334, %335 : vector<2x32xf32>
    %cst_150 = arith.constant 5.000000e-01 : f32
    %337 = vector.broadcast %cst_150 : f32 to vector<2x32xf32>
    %338 = arith.mulf %337, %321 : vector<2x32xf32>
    %339 = math.tanh %338 : vector<2x32xf32>
    %cst_151 = arith.constant 5.000000e-01 : f32
    %340 = vector.broadcast %cst_151 : f32 to vector<2x32xf32>
    %341 = arith.mulf %340, %339 : vector<2x32xf32>
    %cst_152 = arith.constant 5.000000e-01 : f32
    %342 = vector.broadcast %cst_152 : f32 to vector<2x32xf32>
    %343 = arith.addf %341, %342 : vector<2x32xf32>
    %cst_153 = arith.constant 5.000000e-01 : f32
    %344 = vector.broadcast %cst_153 : f32 to vector<2x32xf32>
    %345 = arith.mulf %344, %326 : vector<2x32xf32>
    %346 = math.tanh %345 : vector<2x32xf32>
    %cst_154 = arith.constant 5.000000e-01 : f32
    %347 = vector.broadcast %cst_154 : f32 to vector<2x32xf32>
    %348 = arith.mulf %347, %346 : vector<2x32xf32>
    %cst_155 = arith.constant 5.000000e-01 : f32
    %349 = vector.broadcast %cst_155 : f32 to vector<2x32xf32>
    %350 = arith.addf %348, %349 : vector<2x32xf32>
    %cst_156 = arith.constant 5.000000e-01 : f32
    %351 = vector.broadcast %cst_156 : f32 to vector<2x32xf32>
    %352 = arith.mulf %351, %336 : vector<2x32xf32>
    %353 = math.tanh %352 : vector<2x32xf32>
    %cst_157 = arith.constant 5.000000e-01 : f32
    %354 = vector.broadcast %cst_157 : f32 to vector<2x32xf32>
    %355 = arith.mulf %354, %353 : vector<2x32xf32>
    %cst_158 = arith.constant 5.000000e-01 : f32
    %356 = vector.broadcast %cst_158 : f32 to vector<2x32xf32>
    %357 = arith.addf %355, %356 : vector<2x32xf32>
    %358 = math.tanh %331 : vector<2x32xf32>
    %359 = arith.mulf %350, %312 : vector<2x32xf32>
    %360 = arith.mulf %343, %358 : vector<2x32xf32>
    %361 = arith.addf %359, %360 : vector<2x32xf32>
    %362 = math.tanh %361 : vector<2x32xf32>
    %363 = arith.mulf %357, %362 : vector<2x32xf32>
    %c0_159 = arith.constant 0 : index
    %c0_160 = arith.constant 0 : index
    %364 = vector.load %arg6[%c0_159, %c0_160] : memref<2x32xf32, #tpu.memory_space<vmem>>, vector<2x32xf32>
    tpu.vector_store %arg6[%c0_159, %c0_160], %361 {strides = array<i32>} : memref<2x32xf32, #tpu.memory_space<vmem>>, vector<2x32xf32>,
    %c0_161 = arith.constant 0 : index
    %c0_162 = arith.constant 0 : index
    %365 = vector.load %arg5[%c0_161, %c0_162] : memref<2x32xf32, #tpu.memory_space<vmem>>, vector<2x32xf32>
    tpu.vector_store %arg5[%c0_161, %c0_162], %363 {strides = array<i32>} : memref<2x32xf32, #tpu.memory_space<vmem>>, vector<2x32xf32>,
    %366 = arith.truncf %363 : vector<2x32xf32> to vector<2x32xbf16>
    %367 = arith.index_cast %c5_i32 : i32 to index
    %c0_163 = arith.constant 0 : index
    %c0_164 = arith.constant 0 : index
    %368 = vector.load %arg4[%367, %c0_163, %c0_164] : memref<8x2x32xbf16, #tpu.memory_space<vmem>>, vector<1x2x32xbf16>
    %369 = vector.shape_cast %368 : vector<1x2x32xbf16> to vector<2x32xbf16>
    %370 = vector.shape_cast %366 : vector<2x32xbf16> to vector<1x2x32xbf16>
    tpu.vector_store %arg4[%367, %c0_163, %c0_164], %370 {strides = array<i32>} : memref<8x2x32xbf16, #tpu.memory_space<vmem>>, vector<1x2x32xbf16>,
    %c6_i32 = arith.constant 6 : i32
    %c0_165 = arith.constant 0 : index
    %c0_166 = arith.constant 0 : index
    %371 = vector.load %arg5[%c0_165, %c0_166] : memref<2x32xf32, #tpu.memory_space<vmem>>, vector<2x32xf32>
    %c0_167 = arith.constant 0 : index
    %c0_168 = arith.constant 0 : index
    %372 = vector.load %arg6[%c0_167, %c0_168] : memref<2x32xf32, #tpu.memory_space<vmem>>, vector<2x32xf32>
    %373 = arith.truncf %371 : vector<2x32xf32> to vector<2x32xbf16>
    %374 = arith.index_cast %c6_i32 : i32 to index
    %c0_169 = arith.constant 0 : index
    %c0_170 = arith.constant 0 : index
    %c0_171 = arith.constant 0 : index
    %375 = vector.load %arg2[%374, %c0_169, %c0_170, %c0_171] : memref<8x4x2x32xbf16, #tpu.memory_space<vmem>>, vector<1x4x2x32xbf16>
    %376 = vector.shape_cast %375 : vector<1x4x2x32xbf16> to vector<4x2x32xbf16>
    %377 = vector.extract_strided_slice %376 {offsets = [0, 0, 0], sizes = [1, 2, 32], strides = [1, 1, 1]} : vector<4x2x32xbf16> to vector<1x2x32xbf16>
    %378 = vector.shape_cast %377 : vector<1x2x32xbf16> to vector<2x32xbf16>
    %379 = arith.extf %378 : vector<2x32xbf16> to vector<2x32xf32>
    %cst_172 = arith.constant dense<0.000000e+00> : vector<2x32xf32>
    %380 = tpu.matmul %373, %4, %cst_172 {dimension_numbers = #tpu.dot_dimension_numbers<[1], [0], [0], [1], [0, 0, 1, 1], [], []>} : vector<2x32xbf16>, vector<32x32xbf16>, vector<2x32xf32> -> vector<2x32xf32>
    %381 = arith.addf %379, %380 : vector<2x32xf32>
    %382 = vector.extract_strided_slice %376 {offsets = [1, 0, 0], sizes = [1, 2, 32], strides = [1, 1, 1]} : vector<4x2x32xbf16> to vector<1x2x32xbf16>
    %383 = vector.shape_cast %382 : vector<1x2x32xbf16> to vector<2x32xbf16>
    %384 = arith.extf %383 : vector<2x32xbf16> to vector<2x32xf32>
    %cst_173 = arith.constant dense<0.000000e+00> : vector<2x32xf32>
    %385 = tpu.matmul %373, %6, %cst_173 {dimension_numbers = #tpu.dot_dimension_numbers<[1], [0], [0], [1], [0, 0, 1, 1], [], []>} : vector<2x32xbf16>, vector<32x32xbf16>, vector<2x32xf32> -> vector<2x32xf32>
    %386 = arith.addf %384, %385 : vector<2x32xf32>
    %387 = vector.extract_strided_slice %376 {offsets = [2, 0, 0], sizes = [1, 2, 32], strides = [1, 1, 1]} : vector<4x2x32xbf16> to vector<1x2x32xbf16>
    %388 = vector.shape_cast %387 : vector<1x2x32xbf16> to vector<2x32xbf16>
    %389 = arith.extf %388 : vector<2x32xbf16> to vector<2x32xf32>
    %cst_174 = arith.constant dense<0.000000e+00> : vector<2x32xf32>
    %390 = tpu.matmul %373, %8, %cst_174 {dimension_numbers = #tpu.dot_dimension_numbers<[1], [0], [0], [1], [0, 0, 1, 1], [], []>} : vector<2x32xbf16>, vector<32x32xbf16>, vector<2x32xf32> -> vector<2x32xf32>
    %391 = arith.addf %389, %390 : vector<2x32xf32>
    %392 = vector.extract_strided_slice %376 {offsets = [3, 0, 0], sizes = [1, 2, 32], strides = [1, 1, 1]} : vector<4x2x32xbf16> to vector<1x2x32xbf16>
    %393 = vector.shape_cast %392 : vector<1x2x32xbf16> to vector<2x32xbf16>
    %394 = arith.extf %393 : vector<2x32xbf16> to vector<2x32xf32>
    %cst_175 = arith.constant dense<0.000000e+00> : vector<2x32xf32>
    %395 = tpu.matmul %373, %10, %cst_175 {dimension_numbers = #tpu.dot_dimension_numbers<[1], [0], [0], [1], [0, 0, 1, 1], [], []>} : vector<2x32xbf16>, vector<32x32xbf16>, vector<2x32xf32> -> vector<2x32xf32>
    %396 = arith.addf %394, %395 : vector<2x32xf32>
    %cst_176 = arith.constant 5.000000e-01 : f32
    %397 = vector.broadcast %cst_176 : f32 to vector<2x32xf32>
    %398 = arith.mulf %397, %381 : vector<2x32xf32>
    %399 = math.tanh %398 : vector<2x32xf32>
    %cst_177 = arith.constant 5.000000e-01 : f32
    %400 = vector.broadcast %cst_177 : f32 to vector<2x32xf32>
    %401 = arith.mulf %400, %399 : vector<2x32xf32>
    %cst_178 = arith.constant 5.000000e-01 : f32
    %402 = vector.broadcast %cst_178 : f32 to vector<2x32xf32>
    %403 = arith.addf %401, %402 : vector<2x32xf32>
    %cst_179 = arith.constant 5.000000e-01 : f32
    %404 = vector.broadcast %cst_179 : f32 to vector<2x32xf32>
    %405 = arith.mulf %404, %386 : vector<2x32xf32>
    %406 = math.tanh %405 : vector<2x32xf32>
    %cst_180 = arith.constant 5.000000e-01 : f32
    %407 = vector.broadcast %cst_180 : f32 to vector<2x32xf32>
    %408 = arith.mulf %407, %406 : vector<2x32xf32>
    %cst_181 = arith.constant 5.000000e-01 : f32
    %409 = vector.broadcast %cst_181 : f32 to vector<2x32xf32>
    %410 = arith.addf %408, %409 : vector<2x32xf32>
    %cst_182 = arith.constant 5.000000e-01 : f32
    %411 = vector.broadcast %cst_182 : f32 to vector<2x32xf32>
    %412 = arith.mulf %411, %396 : vector<2x32xf32>
    %413 = math.tanh %412 : vector<2x32xf32>
    %cst_183 = arith.constant 5.000000e-01 : f32
    %414 = vector.broadcast %cst_183 : f32 to vector<2x32xf32>
    %415 = arith.mulf %414, %413 : vector<2x32xf32>
    %cst_184 = arith.constant 5.000000e-01 : f32
    %416 = vector.broadcast %cst_184 : f32 to vector<2x32xf32>
    %417 = arith.addf %415, %416 : vector<2x32xf32>
    %418 = math.tanh %391 : vector<2x32xf32>
    %419 = arith.mulf %410, %372 : vector<2x32xf32>
    %420 = arith.mulf %403, %418 : vector<2x32xf32>
    %421 = arith.addf %419, %420 : vector<2x32xf32>
    %422 = math.tanh %421 : vector<2x32xf32>
    %423 = arith.mulf %417, %422 : vector<2x32xf32>
    %c0_185 = arith.constant 0 : index
    %c0_186 = arith.constant 0 : index
    %424 = vector.load %arg6[%c0_185, %c0_186] : memref<2x32xf32, #tpu.memory_space<vmem>>, vector<2x32xf32>
    tpu.vector_store %arg6[%c0_185, %c0_186], %421 {strides = array<i32>} : memref<2x32xf32, #tpu.memory_space<vmem>>, vector<2x32xf32>,
    %c0_187 = arith.constant 0 : index
    %c0_188 = arith.constant 0 : index
    %425 = vector.load %arg5[%c0_187, %c0_188] : memref<2x32xf32, #tpu.memory_space<vmem>>, vector<2x32xf32>
    tpu.vector_store %arg5[%c0_187, %c0_188], %423 {strides = array<i32>} : memref<2x32xf32, #tpu.memory_space<vmem>>, vector<2x32xf32>,
    %426 = arith.truncf %423 : vector<2x32xf32> to vector<2x32xbf16>
    %427 = arith.index_cast %c6_i32 : i32 to index
    %c0_189 = arith.constant 0 : index
    %c0_190 = arith.constant 0 : index
    %428 = vector.load %arg4[%427, %c0_189, %c0_190] : memref<8x2x32xbf16, #tpu.memory_space<vmem>>, vector<1x2x32xbf16>
    %429 = vector.shape_cast %428 : vector<1x2x32xbf16> to vector<2x32xbf16>
    %430 = vector.shape_cast %426 : vector<2x32xbf16> to vector<1x2x32xbf16>
    tpu.vector_store %arg4[%427, %c0_189, %c0_190], %430 {strides = array<i32>} : memref<8x2x32xbf16, #tpu.memory_space<vmem>>, vector<1x2x32xbf16>,
    %c7_i32 = arith.constant 7 : i32
    %c0_191 = arith.constant 0 : index
    %c0_192 = arith.constant 0 : index
    %431 = vector.load %arg5[%c0_191, %c0_192] : memref<2x32xf32, #tpu.memory_space<vmem>>, vector<2x32xf32>
    %c0_193 = arith.constant 0 : index
    %c0_194 = arith.constant 0 : index
    %432 = vector.load %arg6[%c0_193, %c0_194] : memref<2x32xf32, #tpu.memory_space<vmem>>, vector<2x32xf32>
    %433 = arith.truncf %431 : vector<2x32xf32> to vector<2x32xbf16>
    %434 = arith.index_cast %c7_i32 : i32 to index
    %c0_195 = arith.constant 0 : index
    %c0_196 = arith.constant 0 : index
    %c0_197 = arith.constant 0 : index
    %435 = vector.load %arg2[%434, %c0_195, %c0_196, %c0_197] : memref<8x4x2x32xbf16, #tpu.memory_space<vmem>>, vector<1x4x2x32xbf16>
    %436 = vector.shape_cast %435 : vector<1x4x2x32xbf16> to vector<4x2x32xbf16>
    %437 = vector.extract_strided_slice %436 {offsets = [0, 0, 0], sizes = [1, 2, 32], strides = [1, 1, 1]} : vector<4x2x32xbf16> to vector<1x2x32xbf16>
    %438 = vector.shape_cast %437 : vector<1x2x32xbf16> to vector<2x32xbf16>
    %439 = arith.extf %438 : vector<2x32xbf16> to vector<2x32xf32>
    %cst_198 = arith.constant dense<0.000000e+00> : vector<2x32xf32>
    %440 = tpu.matmul %433, %4, %cst_198 {dimension_numbers = #tpu.dot_dimension_numbers<[1], [0], [0], [1], [0, 0, 1, 1], [], []>} : vector<2x32xbf16>, vector<32x32xbf16>, vector<2x32xf32> -> vector<2x32xf32>
    %441 = arith.addf %439, %440 : vector<2x32xf32>
    %442 = vector.extract_strided_slice %436 {offsets = [1, 0, 0], sizes = [1, 2, 32], strides = [1, 1, 1]} : vector<4x2x32xbf16> to vector<1x2x32xbf16>
    %443 = vector.shape_cast %442 : vector<1x2x32xbf16> to vector<2x32xbf16>
    %444 = arith.extf %443 : vector<2x32xbf16> to vector<2x32xf32>
    %cst_199 = arith.constant dense<0.000000e+00> : vector<2x32xf32>
    %445 = tpu.matmul %433, %6, %cst_199 {dimension_numbers = #tpu.dot_dimension_numbers<[1], [0], [0], [1], [0, 0, 1, 1], [], []>} : vector<2x32xbf16>, vector<32x32xbf16>, vector<2x32xf32> -> vector<2x32xf32>
    %446 = arith.addf %444, %445 : vector<2x32xf32>
    %447 = vector.extract_strided_slice %436 {offsets = [2, 0, 0], sizes = [1, 2, 32], strides = [1, 1, 1]} : vector<4x2x32xbf16> to vector<1x2x32xbf16>
    %448 = vector.shape_cast %447 : vector<1x2x32xbf16> to vector<2x32xbf16>
    %449 = arith.extf %448 : vector<2x32xbf16> to vector<2x32xf32>
    %cst_200 = arith.constant dense<0.000000e+00> : vector<2x32xf32>
    %450 = tpu.matmul %433, %8, %cst_200 {dimension_numbers = #tpu.dot_dimension_numbers<[1], [0], [0], [1], [0, 0, 1, 1], [], []>} : vector<2x32xbf16>, vector<32x32xbf16>, vector<2x32xf32> -> vector<2x32xf32>
    %451 = arith.addf %449, %450 : vector<2x32xf32>
    %452 = vector.extract_strided_slice %436 {offsets = [3, 0, 0], sizes = [1, 2, 32], strides = [1, 1, 1]} : vector<4x2x32xbf16> to vector<1x2x32xbf16>
    %453 = vector.shape_cast %452 : vector<1x2x32xbf16> to vector<2x32xbf16>
    %454 = arith.extf %453 : vector<2x32xbf16> to vector<2x32xf32>
    %cst_201 = arith.constant dense<0.000000e+00> : vector<2x32xf32>
    %455 = tpu.matmul %433, %10, %cst_201 {dimension_numbers = #tpu.dot_dimension_numbers<[1], [0], [0], [1], [0, 0, 1, 1], [], []>} : vector<2x32xbf16>, vector<32x32xbf16>, vector<2x32xf32> -> vector<2x32xf32>
    %456 = arith.addf %454, %455 : vector<2x32xf32>
    %cst_202 = arith.constant 5.000000e-01 : f32
    %457 = vector.broadcast %cst_202 : f32 to vector<2x32xf32>
    %458 = arith.mulf %457, %441 : vector<2x32xf32>
    %459 = math.tanh %458 : vector<2x32xf32>
    %cst_203 = arith.constant 5.000000e-01 : f32
    %460 = vector.broadcast %cst_203 : f32 to vector<2x32xf32>
    %461 = arith.mulf %460, %459 : vector<2x32xf32>
    %cst_204 = arith.constant 5.000000e-01 : f32
    %462 = vector.broadcast %cst_204 : f32 to vector<2x32xf32>
    %463 = arith.addf %461, %462 : vector<2x32xf32>
    %cst_205 = arith.constant 5.000000e-01 : f32
    %464 = vector.broadcast %cst_205 : f32 to vector<2x32xf32>
    %465 = arith.mulf %464, %446 : vector<2x32xf32>
    %466 = math.tanh %465 : vector<2x32xf32>
    %cst_206 = arith.constant 5.000000e-01 : f32
    %467 = vector.broadcast %cst_206 : f32 to vector<2x32xf32>
    %468 = arith.mulf %467, %466 : vector<2x32xf32>
    %cst_207 = arith.constant 5.000000e-01 : f32
    %469 = vector.broadcast %cst_207 : f32 to vector<2x32xf32>
    %470 = arith.addf %468, %469 : vector<2x32xf32>
    %cst_208 = arith.constant 5.000000e-01 : f32
    %471 = vector.broadcast %cst_208 : f32 to vector<2x32xf32>
    %472 = arith.mulf %471, %456 : vector<2x32xf32>
    %473 = math.tanh %472 : vector<2x32xf32>
    %cst_209 = arith.constant 5.000000e-01 : f32
    %474 = vector.broadcast %cst_209 : f32 to vector<2x32xf32>
    %475 = arith.mulf %474, %473 : vector<2x32xf32>
    %cst_210 = arith.constant 5.000000e-01 : f32
    %476 = vector.broadcast %cst_210 : f32 to vector<2x32xf32>
    %477 = arith.addf %475, %476 : vector<2x32xf32>
    %478 = math.tanh %451 : vector<2x32xf32>
    %479 = arith.mulf %470, %432 : vector<2x32xf32>
    %480 = arith.mulf %463, %478 : vector<2x32xf32>
    %481 = arith.addf %479, %480 : vector<2x32xf32>
    %482 = math.tanh %481 : vector<2x32xf32>
    %483 = arith.mulf %477, %482 : vector<2x32xf32>
    %c0_211 = arith.constant 0 : index
    %c0_212 = arith.constant 0 : index
    %484 = vector.load %arg6[%c0_211, %c0_212] : memref<2x32xf32, #tpu.memory_space<vmem>>, vector<2x32xf32>
    tpu.vector_store %arg6[%c0_211, %c0_212], %481 {strides = array<i32>} : memref<2x32xf32, #tpu.memory_space<vmem>>, vector<2x32xf32>,
    %c0_213 = arith.constant 0 : index
    %c0_214 = arith.constant 0 : index
    %485 = vector.load %arg5[%c0_213, %c0_214] : memref<2x32xf32, #tpu.memory_space<vmem>>, vector<2x32xf32>
    tpu.vector_store %arg5[%c0_213, %c0_214], %483 {strides = array<i32>} : memref<2x32xf32, #tpu.memory_space<vmem>>, vector<2x32xf32>,
    %486 = arith.truncf %483 : vector<2x32xf32> to vector<2x32xbf16>
    %487 = arith.index_cast %c7_i32 : i32 to index
    %c0_215 = arith.constant 0 : index
    %c0_216 = arith.constant 0 : index
    %488 = vector.load %arg4[%487, %c0_215, %c0_216] : memref<8x2x32xbf16, #tpu.memory_space<vmem>>, vector<1x2x32xbf16>
    %489 = vector.shape_cast %488 : vector<1x2x32xbf16> to vector<2x32xbf16>
    %490 = vector.shape_cast %486 : vector<2x32xbf16> to vector<1x2x32xbf16>
    tpu.vector_store %arg4[%487, %c0_215, %c0_216], %490 {strides = array<i32>} : memref<8x2x32xbf16, #tpu.memory_space<vmem>>, vector<1x2x32xbf16>,
    %c8_i32 = arith.constant 8 : i32
    return
  }
  func.func @transform_0(%arg0: i32, %arg1: i32) -> (i32, i32, i32, i32) {
    %c0_i32 = arith.constant 0 : i32
    %c0_i32_0 = arith.constant 0 : i32
    %c0_i32_1 = arith.constant 0 : i32
    return %arg1, %c0_i32, %arg0, %c0_i32_0 : i32, i32, i32, i32
  }
  func.func @transform_1(%arg0: i32, %arg1: i32) -> (i32, i32, i32) {
    %c0_i32 = arith.constant 0 : i32
    %c0_i32_0 = arith.constant 0 : i32
    %c0_i32_1 = arith.constant 0 : i32
    %c0_i32_2 = arith.constant 0 : i32
    return %c0_i32, %c0_i32_0, %c0_i32_1 : i32, i32, i32
  }
  func.func @transform_2(%arg0: i32, %arg1: i32) -> (i32, i32, i32) {
    %c0_i32 = arith.constant 0 : i32
    %c0_i32_0 = arith.constant 0 : i32
    return %arg1, %arg0, %c0_i32 : i32, i32, i32
  }
}

</mosaic_0001>

<llo_original>
// kernel: tpu_custom_call.1
$region0: #{tpu_custom_call.1}
  #allocation0 [shape = 'u32[]', space=smem, size = 0x4, offset = 0x4, fixed_abs, tag = 'smem constant byte address 0x4 - core index']
  #allocation1 [shape = 'u32[144,128]{1,0:T(1,128)}', space=vmem, size = 0x12000, scoped, tag = 'internal scratch']
  #allocation2 [shape = 'f32[2,32]{1,0:T(2,128)}', space=vmem, size = 0x400, scoped, tag = 'scratch operand']
  #allocation3 [shape = 'f32[2,32]{1,0:T(2,128)}', space=vmem, size = 0x400, scoped, tag = 'scratch operand']
  %s0 = inlined_call_operand.hbm [shape: bf16[8,4,2,32], index: 0, kind: input, shape index: {}]
  %s1 = inlined_call_operand.hbm [shape: bf16[4,32,32], index: 1, kind: input, shape index: {}]
  %s2 = inlined_call_operand.hbm [shape: bf16[8,2,32], index: 2, kind: output, shape index: {}]
  %s3 = sld [smem:[#allocation0]]
  $region30: #{tpu_custom_call.1} parent=0
    _
  %s5 = ssub.s32 1, %s3
  %s6 = scalar_select 0, %s5, %s3
  $region1: #{tpu_custom_call.1} parent=0
    #allocation4 [shape = 'u8[16384]{0}', space=vmem, size = 0x4000, scoped, tag = 'input window, operand 0, single buffered']
    #allocation5 [shape = 's32[1]{0}', space=sflag, size = 0x4, scoped, tag = 'scoped memory for tpu_custom_call.1']
    #allocation6 [shape = 's32[1]{0}', space=sflag, size = 0x4, scoped, tag = 'scoped memory for tpu_custom_call.1']
    #allocation7 [shape = 'u8[32768]{0}', space=vmem, size = 0x8000, scoped, tag = 'input window, operand 1, single buffered']
    #allocation8 [shape = 's32[1]{0}', space=sflag, size = 0x4, scoped, tag = 'scoped memory for tpu_custom_call.1']
    #allocation9 [shape = 'u8[4096]{0}', space=vmem, size = 0x1000, scoped, tag = 'output window, operand 0, single buffered']
    %7 = vsyncpa [#allocation5], 0
    %8 = vsyncpa [#allocation8], 0
    %9 = vsyncpa [#allocation6], 0
    // Predicated region
    $region2: #{tpu_custom_call.1} parent=1 // pred_check
      _
    $region3: #{tpu_custom_call.1} parent=1 // pred_check_branch
      %11 = sbr.rel (0) target = $region5
    $region4: #{tpu_custom_call.1} parent=1 // pred_region
      %s13 = ssub.s32 512, 512
      %14 = vsyncadd [#allocation5], %s13
      %s15 = sshll.u32 [#allocation4], 4
      %s16 = int_to_ptr.vmem [resolvable:$true] %s15
      %21 = dma.hbm_to_vmem [thread:$0]  %s0, 512, %s16, [#allocation5], 16, 16, 1
    $region5: #{tpu_custom_call.1} parent=1 // pred_fallthru
      _
    // Predicated region
    $region6: #{tpu_custom_call.1} parent=1 // pred_check
      _
    $region7: #{tpu_custom_call.1} parent=1 // pred_check_branch
      %23 = sbr.rel (0) target = $region9
    $region8: #{tpu_custom_call.1} parent=1 // pred_region
      %s25 = ssub.s32 1024, 1024
      %26 = vsyncadd [#allocation8], %s25
      %s27 = sshll.u32 [#allocation7], 4
      %s28 = int_to_ptr.vmem [resolvable:$true] %s27
      %33 = dma.hbm_to_vmem [thread:$0]  %s1, 1024, %s28, [#allocation8], 64, 64, 4
    $region9: #{tpu_custom_call.1} parent=1 // pred_fallthru
      _
    // Predicated region
    $region10: #{tpu_custom_call.1} parent=1 // pred_check
      _
    $region11: #{tpu_custom_call.1} parent=1 // pred_check_branch
      %35 = sbr.rel (0) target = $region13
    $region12: #{tpu_custom_call.1} parent=1 // pred_region
      %36 = dma.done [#allocation5], 512
    $region13: #{tpu_custom_call.1} parent=1 // pred_fallthru
      _
    // Predicated region
    $region14: #{tpu_custom_call.1} parent=1 // pred_check
      _
    $region15: #{tpu_custom_call.1} parent=1 // pred_check_branch
      %38 = sbr.rel (0) target = $region17
    $region16: #{tpu_custom_call.1} parent=1 // pred_region
      %39 = dma.done [#allocation8], 1024
    $region17: #{tpu_custom_call.1} parent=1 // pred_fallthru
      _
    %p41 = scmp.eq.s32.totalorder 0, 0
    // Predicated region
    $region18: #{tpu_custom_call.1} parent=1 // pred_check
      %p42 = pneg %p41
    $region19: #{tpu_custom_call.1} parent=1 // pred_check_branch
      %44 = sbr.rel (%p42) target = $region21
    $region20: #{tpu_custom_call.1} parent=1 // pred_region
      %vm45 = vcmask 254976
      %46 = vst.msk [vmem:[#allocation2] sm:$0x3] %vm45, 0.0
      %47 = vst.msk [vmem:[#allocation3] sm:$0x3] %vm45, 0.0
    $region21: #{tpu_custom_call.1} parent=1 // pred_fallthru
      _
    %v48 = vld [vmem:[#allocation7] sm:$0xf]
    %v49 = vld [vmem:[#allocation7 + $0x4] sm:$0xf]
    %v50 = vld [vmem:[#allocation7 + $0x8] sm:$0xf]
    %v51 = vld [vmem:[#allocation7 + $0xc] sm:$0xf]
    %s52 = scalar_lea.vmem [#allocation7], 16
    %v53 = vld [vmem:[%s52] sm:$0xf]
    %v54 = vld [vmem:[%s52 + $0x4] sm:$0xf]
    %v55 = vld [vmem:[%s52 + $0x8] sm:$0xf]
    %v56 = vld [vmem:[%s52 + $0xc] sm:$0xf]
    %s57 = scalar_lea.vmem [#allocation7], 32
    %v58 = vld [vmem:[%s57] sm:$0xf]
    %v59 = vld [vmem:[%s57 + $0x4] sm:$0xf]
    %v60 = vld [vmem:[%s57 + $0x8] sm:$0xf]
    %v61 = vld [vmem:[%s57 + $0xc] sm:$0xf]
    %s62 = scalar_lea.vmem [#allocation7], 48
    %v63 = vld [vmem:[%s62] sm:$0xf]
    %v64 = vld [vmem:[%s62 + $0x4] sm:$0xf]
    %v65 = vld [vmem:[%s62 + $0x8] sm:$0xf]
    %v66 = vld [vmem:[%s62 + $0xc] sm:$0xf]
    %v67 = vld [vmem:[#allocation2] sm:$0x3]
    %v68 = vld [vmem:[#allocation3] sm:$0x3]
    %v69 = vpack.c.bf16 %v67, %v67
    %v70 = vld [vmem:[#allocation4] sm:$0x1]
    %v71 = vld [vmem:[#allocation4 + $0x1] sm:$0x1]
    %v72 = vld [vmem:[#allocation4 + $0x2] sm:$0x1]
    %v73 = vld [vmem:[#allocation4 + $0x3] sm:$0x1]
    %v74 = vunpack.c.l.bf16 %v70
    %v79 = vunpack.c.l.b16 %v48
    %v80 = vunpack.c.l.b16 %v49
    %v81 = vunpack.c.l.b16 %v50
    %v82 = vunpack.c.l.b16 %v51
    %v83 = vpack.c.b16 %v80, %v79
    %v84 = vpack.c.b16 %v82, %v81
    %vm87 = vcmask 261120
    %v89 = vsel %vm87, %v69, 0
    %91 = vmatprep.subr.bf16.mxu0 0
    %92 = vmatpush1.bf16.msra.mxu0 %v83
    %93 = vmatprep.subr.bf16.mxu0 0
    %94 = vmatpush1.bf16.msra.mxu0 %v84
    %95 = vmatprep.subr.bf16.mxu0 0
    %96 = vmatpush1.bf16.msra.mxu0 0
    %97 = vmatprep.subr.bf16.mxu0 0
    %98 = vmatpush1.bf16.msra.mxu0 0
    %99 = vmatprep.subr.bf16.mxu0 0
    %100 = vmatpush1.bf16.msra.mxu0 0
    %101 = vmatprep.subr.bf16.mxu0 0
    %102 = vmatpush1.bf16.msra.mxu0 0
    %103 = vmatprep.subr.bf16.mxu0 0
    %104 = vmatpush1.bf16.msra.mxu0 0
    %105 = vmatprep.subr.bf16.mxu0 0
    %106 = vmatpush1.bf16.msra.mxu0 0
    %107 = vmatprep.subr.bf16.mxu0 0
    %108 = vmatpush1.bf16.msra.mxu0 0
    %109 = vmatprep.subr.bf16.mxu0 0
    %110 = vmatpush1.bf16.msra.mxu0 0
    %111 = vmatprep.subr.bf16.mxu0 0
    %112 = vmatpush1.bf16.msra.mxu0 0
    %113 = vmatprep.subr.bf16.mxu0 0
    %114 = vmatpush1.bf16.msra.mxu0 0
    %115 = vmatprep.subr.bf16.mxu0 0
    %116 = vmatpush1.bf16.msra.mxu0 0
    %117 = vmatprep.subr.bf16.mxu0 0
    %118 = vmatpush1.bf16.msra.mxu0 0
    %119 = vmatprep.subr.bf16.mxu0 0
    %120 = vmatpush1.bf16.msra.mxu0 0
    %121 = vmatprep.subr.bf16.mxu0 0
    %122 = vmatpush1.bf16.msra.mxu0 0
    %123 = vmatprep.mubr.bf16.mxu0 0
    %124 = vmatmul.mubr.bf16.gmra.mrb[0].mxu0 %v89
    %v125 = vpop.f32.mrb[0].mxu0
    %v126 = vadd.f32 0.0, %v125
    %v127 = vpop.f32.mrb[0].mxu0
    %v128 = vpop.f32.mrb[0].mxu0
    %v129 = vpop.f32.mrb[0].mxu0
    %130 = vdwg.mxu0
    %v131 = vadd.f32 %v74, %v126
    %v132 = vunpack.c.l.bf16 %v71
    %v137 = vunpack.c.l.b16 %v53
    %v138 = vunpack.c.l.b16 %v54
    %v139 = vunpack.c.l.b16 %v55
    %v140 = vunpack.c.l.b16 %v56
    %v141 = vpack.c.b16 %v138, %v137
    %v142 = vpack.c.b16 %v140, %v139
    %145 = vmatprep.subr.bf16.mxu0 0
    %146 = vmatpush1.bf16.msra.mxu0 %v141
    %147 = vmatprep.subr.bf16.mxu0 0
    %148 = vmatpush1.bf16.msra.mxu0 %v142
    %149 = vmatprep.subr.bf16.mxu0 0
    %150 = vmatpush1.bf16.msra.mxu0 0
    %151 = vmatprep.subr.bf16.mxu0 0
    %152 = vmatpush1.bf16.msra.mxu0 0
    %153 = vmatprep.subr.bf16.mxu0 0
    %154 = vmatpush1.bf16.msra.mxu0 0
    %155 = vmatprep.subr.bf16.mxu0 0
    %156 = vmatpush1.bf16.msra.mxu0 0
    %157 = vmatprep.subr.bf16.mxu0 0
    %158 = vmatpush1.bf16.msra.mxu0 0
    %159 = vmatprep.subr.bf16.mxu0 0
    %160 = vmatpush1.bf16.msra.mxu0 0
    %161 = vmatprep.subr.bf16.mxu0 0
    %162 = vmatpush1.bf16.msra.mxu0 0
    %163 = vmatprep.subr.bf16.mxu0 0
    %164 = vmatpush1.bf16.msra.mxu0 0
    %165 = vmatprep.subr.bf16.mxu0 0
    %166 = vmatpush1.bf16.msra.mxu0 0
    %167 = vmatprep.subr.bf16.mxu0 0
    %168 = vmatpush1.bf16.msra.mxu0 0
    %169 = vmatprep.subr.bf16.mxu0 0
    %170 = vmatpush1.bf16.msra.mxu0 0
    %171 = vmatprep.subr.bf16.mxu0 0
    %172 = vmatpush1.bf16.msra.mxu0 0
    %173 = vmatprep.subr.bf16.mxu0 0
    %174 = vmatpush1.bf16.msra.mxu0 0
    %175 = vmatprep.subr.bf16.mxu0 0
    %176 = vmatpush1.bf16.msra.mxu0 0
    %177 = vmatprep.mubr.bf16.mxu0 0
    %178 = vmatmul.mubr.bf16.gmra.mrb[0].mxu0 %v89
    %v179 = vpop.f32.mrb[0].mxu0
    %v180 = vadd.f32 0.0, %v179
    %v181 = vpop.f32.mrb[0].mxu0
    %v182 = vpop.f32.mrb[0].mxu0
    %v183 = vpop.f32.mrb[0].mxu0
    %184 = vdwg.mxu0
    %v185 = vadd.f32 %v132, %v180
    %v186 = vunpack.c.l.bf16 %v72
    %v191 = vunpack.c.l.b16 %v58
    %v192 = vunpack.c.l.b16 %v59
    %v193 = vunpack.c.l.b16 %v60
    %v194 = vunpack.c.l.b16 %v61
    %v195 = vpack.c.b16 %v192, %v191
    %v196 = vpack.c.b16 %v194, %v193
    %199 = vmatprep.subr.bf16.mxu0 0
    %200 = vmatpush1.bf16.msra.mxu0 %v195
    %201 = vmatprep.subr.bf16.mxu0 0
    %202 = vmatpush1.bf16.msra.mxu0 %v196
    %203 = vmatprep.subr.bf16.mxu0 0
    %204 = vmatpush1.bf16.msra.mxu0 0
    %205 = vmatprep.subr.bf16.mxu0 0
    %206 = vmatpush1.bf16.msra.mxu0 0
    %207 = vmatprep.subr.bf16.mxu0 0
    %208 = vmatpush1.bf16.msra.mxu0 0
    %209 = vmatprep.subr.bf16.mxu0 0
    %210 = vmatpush1.bf16.msra.mxu0 0
    %211 = vmatprep.subr.bf16.mxu0 0
    %212 = vmatpush1.bf16.msra.mxu0 0
    %213 = vmatprep.subr.bf16.mxu0 0
    %214 = vmatpush1.bf16.msra.mxu0 0
    %215 = vmatprep.subr.bf16.mxu0 0
    %216 = vmatpush1.bf16.msra.mxu0 0
    %217 = vmatprep.subr.bf16.mxu0 0
    %218 = vmatpush1.bf16.msra.mxu0 0
    %219 = vmatprep.subr.bf16.mxu0 0
    %220 = vmatpush1.bf16.msra.mxu0 0
    %221 = vmatprep.subr.bf16.mxu0 0
    %222 = vmatpush1.bf16.msra.mxu0 0
    %223 = vmatprep.subr.bf16.mxu0 0
    %224 = vmatpush1.bf16.msra.mxu0 0
    %225 = vmatprep.subr.bf16.mxu0 0
    %226 = vmatpush1.bf16.msra.mxu0 0
    %227 = vmatprep.subr.bf16.mxu0 0
    %228 = vmatpush1.bf16.msra.mxu0 0
    %229 = vmatprep.subr.bf16.mxu0 0
    %230 = vmatpush1.bf16.msra.mxu0 0
    %231 = vmatprep.mubr.bf16.mxu0 0
    %232 = vmatmul.mubr.bf16.gmra.mrb[0].mxu0 %v89
    %v233 = vpop.f32.mrb[0].mxu0
    %v234 = vadd.f32 0.0, %v233
    %v235 = vpop.f32.mrb[0].mxu0
    %v236 = vpop.f32.mrb[0].mxu0
    %v237 = vpop.f32.mrb[0].mxu0
    %238 = vdwg.mxu0
    %v239 = vadd.f32 %v186, %v234
    %v240 = vunpack.c.l.bf16 %v73
    %v245 = vunpack.c.l.b16 %v63
    %v246 = vunpack.c.l.b16 %v64
    %v247 = vunpack.c.l.b16 %v65
    %v248 = vunpack.c.l.b16 %v66
    %v249 = vpack.c.b16 %v246, %v245
    %v250 = vpack.c.b16 %v248, %v247
    %253 = vmatprep.subr.bf16.mxu0 0
    %254 = vmatpush1.bf16.msra.mxu0 %v249
    %255 = vmatprep.subr.bf16.mxu0 0
    %256 = vmatpush1.bf16.msra.mxu0 %v250
    %257 = vmatprep.subr.bf16.mxu0 0
    %258 = vmatpush1.bf16.msra.mxu0 0
    %259 = vmatprep.subr.bf16.mxu0 0
    %260 = vmatpush1.bf16.msra.mxu0 0
    %261 = vmatprep.subr.bf16.mxu0 0
    %262 = vmatpush1.bf16.msra.mxu0 0
    %263 = vmatprep.subr.bf16.mxu0 0
    %264 = vmatpush1.bf16.msra.mxu0 0
    %265 = vmatprep.subr.bf16.mxu0 0
    %266 = vmatpush1.bf16.msra.mxu0 0
    %267 = vmatprep.subr.bf16.mxu0 0
    %268 = vmatpush1.bf16.msra.mxu0 0
    %269 = vmatprep.subr.bf16.mxu0 0
    %270 = vmatpush1.bf16.msra.mxu0 0
    %271 = vmatprep.subr.bf16.mxu0 0
    %272 = vmatpush1.bf16.msra.mxu0 0
    %273 = vmatprep.subr.bf16.mxu0 0
    %274 = vmatpush1.bf16.msra.mxu0 0
    %275 = vmatprep.subr.bf16.mxu0 0
    %276 = vmatpush1.bf16.msra.mxu0 0
    %277 = vmatprep.subr.bf16.mxu0 0
    %278 = vmatpush1.bf16.msra.mxu0 0
    %279 = vmatprep.subr.bf16.mxu0 0
    %280 = vmatpush1.bf16.msra.mxu0 0
    %281 = vmatprep.subr.bf16.mxu0 0
    %282 = vmatpush1.bf16.msra.mxu0 0
    %283 = vmatprep.subr.bf16.mxu0 0
    %284 = vmatpush1.bf16.msra.mxu0 0
    %285 = vmatprep.mubr.bf16.mxu0 0
    %286 = vmatmul.mubr.bf16.gmra.mrb[0].mxu0 %v89
    %v287 = vpop.f32.mrb[0].mxu0
    %v288 = vadd.f32 0.0, %v287
    %v289 = vpop.f32.mrb[0].mxu0
    %v290 = vpop.f32.mrb[0].mxu0
    %v291 = vpop.f32.mrb[0].mxu0
    %292 = vdwg.mxu0
    %v293 = vadd.f32 %v240, %v288
    %v294 = vmul.f32 %v131, 0.5
    %v295 = vtanh.pop %v294
    %v296 = vmul.f32 %v295, 0.5
    %v297 = vadd.f32 %v296, 0.5
    %v298 = vmul.f32 %v185, 0.5
    %v299 = vtanh.pop %v298
    %v300 = vmul.f32 %v299, 0.5
    %v301 = vadd.f32 %v300, 0.5
    %v302 = vmul.f32 %v293, 0.5
    %v303 = vtanh.pop %v302
    %v304 = vmul.f32 %v303, 0.5
    %v305 = vadd.f32 %v304, 0.5
    %v306 = vtanh.pop %v239
    %v307 = vmul.f32 %v301, %v68
    %v308 = vmul.f32 %v297, %v306
    %v309 = vadd.f32 %v307, %v308
    %v310 = vtanh.pop %v309
    %v311 = vmul.f32 %v305, %v310
    %vm312 = vcmask 254976
    %313 = vst.msk [vmem:[#allocation3] sm:$0x3] %vm312, %v309
    %314 = vst.msk [vmem:[#allocation2] sm:$0x3] %vm312, %v311
    %v315 = vpack.c.bf16 %v311, %v311
    %vm316 = vcmask 253952
    %317 = vst.msk [vmem:[#allocation9] sm:$0x1] %vm316, %v315
    %v318 = vld [vmem:[#allocation2] sm:$0x3]
    %v319 = vld [vmem:[#allocation3] sm:$0x3]
    %v320 = vpack.c.bf16 %v318, %v318
    %s321 = scalar_lea.vmem [#allocation4], 4
    %v322 = vld [vmem:[%s321] sm:$0x1]
    %v323 = vld [vmem:[%s321 + $0x1] sm:$0x1]
    %v324 = vld [vmem:[%s321 + $0x2] sm:$0x1]
    %v325 = vld [vmem:[%s321 + $0x3] sm:$0x1]
    %v326 = vunpack.c.l.bf16 %v322
    %v328 = vsel %vm87, %v320, 0
    %330 = vmatprep.subr.bf16.mxu0 0
    %331 = vmatpush1.bf16.msra.mxu0 %v83
    %332 = vmatprep.subr.bf16.mxu0 0
    %333 = vmatpush1.bf16.msra.mxu0 %v84
    %334 = vmatprep.subr.bf16.mxu0 0
    %335 = vmatpush1.bf16.msra.mxu0 0
    %336 = vmatprep.subr.bf16.mxu0 0
    %337 = vmatpush1.bf16.msra.mxu0 0
    %338 = vmatprep.subr.bf16.mxu0 0
    %339 = vmatpush1.bf16.msra.mxu0 0
    %340 = vmatprep.subr.bf16.mxu0 0
    %341 = vmatpush1.bf16.msra.mxu0 0
    %342 = vmatprep.subr.bf16.mxu0 0
    %343 = vmatpush1.bf16.msra.mxu0 0
    %344 = vmatprep.subr.bf16.mxu0 0
    %345 = vmatpush1.bf16.msra.mxu0 0
    %346 = vmatprep.subr.bf16.mxu0 0
    %347 = vmatpush1.bf16.msra.mxu0 0
    %348 = vmatprep.subr.bf16.mxu0 0
    %349 = vmatpush1.bf16.msra.mxu0 0
    %350 = vmatprep.subr.bf16.mxu0 0
    %351 = vmatpush1.bf16.msra.mxu0 0
    %352 = vmatprep.subr.bf16.mxu0 0
    %353 = vmatpush1.bf16.msra.mxu0 0
    %354 = vmatprep.subr.bf16.mxu0 0
    %355 = vmatpush1.bf16.msra.mxu0 0
    %356 = vmatprep.subr.bf16.mxu0 0
    %357 = vmatpush1.bf16.msra.mxu0 0
    %358 = vmatprep.subr.bf16.mxu0 0
    %359 = vmatpush1.bf16.msra.mxu0 0
    %360 = vmatprep.subr.bf16.mxu0 0
    %361 = vmatpush1.bf16.msra.mxu0 0
    %362 = vmatprep.mubr.bf16.mxu0 0
    %363 = vmatmul.mubr.bf16.gmra.mrb[0].mxu0 %v328
    %v364 = vpop.f32.mrb[0].mxu0
    %v365 = vadd.f32 0.0, %v364
    %v366 = vpop.f32.mrb[0].mxu0
    %v367 = vpop.f32.mrb[0].mxu0
    %v368 = vpop.f32.mrb[0].mxu0
    %369 = vdwg.mxu0
    %v370 = vadd.f32 %v326, %v365
    %v371 = vunpack.c.l.bf16 %v323
    %372 = vmatprep.subr.bf16.mxu0 0
    %373 = vmatpush1.bf16.msra.mxu0 %v141
    %374 = vmatprep.subr.bf16.mxu0 0
    %375 = vmatpush1.bf16.msra.mxu0 %v142
    %376 = vmatprep.subr.bf16.mxu0 0
    %377 = vmatpush1.bf16.msra.mxu0 0
    %378 = vmatprep.subr.bf16.mxu0 0
    %379 = vmatpush1.bf16.msra.mxu0 0
    %380 = vmatprep.subr.bf16.mxu0 0
    %381 = vmatpush1.bf16.msra.mxu0 0
    %382 = vmatprep.subr.bf16.mxu0 0
    %383 = vmatpush1.bf16.msra.mxu0 0
    %384 = vmatprep.subr.bf16.mxu0 0
    %385 = vmatpush1.bf16.msra.mxu0 0
    %386 = vmatprep.subr.bf16.mxu0 0
    %387 = vmatpush1.bf16.msra.mxu0 0
    %388 = vmatprep.subr.bf16.mxu0 0
    %389 = vmatpush1.bf16.msra.mxu0 0
    %390 = vmatprep.subr.bf16.mxu0 0
    %391 = vmatpush1.bf16.msra.mxu0 0
    %392 = vmatprep.subr.bf16.mxu0 0
    %393 = vmatpush1.bf16.msra.mxu0 0
    %394 = vmatprep.subr.bf16.mxu0 0
    %395 = vmatpush1.bf16.msra.mxu0 0
    %396 = vmatprep.subr.bf16.mxu0 0
    %397 = vmatpush1.bf16.msra.mxu0 0
    %398 = vmatprep.subr.bf16.mxu0 0
    %399 = vmatpush1.bf16.msra.mxu0 0
    %400 = vmatprep.subr.bf16.mxu0 0
    %401 = vmatpush1.bf16.msra.mxu0 0
    %402 = vmatprep.subr.bf16.mxu0 0
    %403 = vmatpush1.bf16.msra.mxu0 0
    %404 = vmatprep.mubr.bf16.mxu0 0
    %405 = vmatmul.mubr.bf16.gmra.mrb[0].mxu0 %v328
    %v406 = vpop.f32.mrb[0].mxu0
    %v407 = vadd.f32 0.0, %v406
    %v408 = vpop.f32.mrb[0].mxu0
    %v409 = vpop.f32.mrb[0].mxu0
    %v410 = vpop.f32.mrb[0].mxu0
    %411 = vdwg.mxu0
    %v412 = vadd.f32 %v371, %v407
    %v413 = vunpack.c.l.bf16 %v324
    %414 = vmatprep.subr.bf16.mxu0 0
    %415 = vmatpush1.bf16.msra.mxu0 %v195
    %416 = vmatprep.subr.bf16.mxu0 0
    %417 = vmatpush1.bf16.msra.mxu0 %v196
    %418 = vmatprep.subr.bf16.mxu0 0
    %419 = vmatpush1.bf16.msra.mxu0 0
    %420 = vmatprep.subr.bf16.mxu0 0
    %421 = vmatpush1.bf16.msra.mxu0 0
    %422 = vmatprep.subr.bf16.mxu0 0
    %423 = vmatpush1.bf16.msra.mxu0 0
    %424 = vmatprep.subr.bf16.mxu0 0
    %425 = vmatpush1.bf16.msra.mxu0 0
    %426 = vmatprep.subr.bf16.mxu0 0
    %427 = vmatpush1.bf16.msra.mxu0 0
    %428 = vmatprep.subr.bf16.mxu0 0
    %429 = vmatpush1.bf16.msra.mxu0 0
    %430 = vmatprep.subr.bf16.mxu0 0
    %431 = vmatpush1.bf16.msra.mxu0 0
    %432 = vmatprep.subr.bf16.mxu0 0
    %433 = vmatpush1.bf16.msra.mxu0 0
    %434 = vmatprep.subr.bf16.mxu0 0
    %435 = vmatpush1.bf16.msra.mxu0 0
    %436 = vmatprep.subr.bf16.mxu0 0
    %437 = vmatpush1.bf16.msra.mxu0 0
    %438 = vmatprep.subr.bf16.mxu0 0
    %439 = vmatpush1.bf16.msra.mxu0 0
    %440 = vmatprep.subr.bf16.mxu0 0
    %441 = vmatpush1.bf16.msra.mxu0 0
    %442 = vmatprep.subr.bf16.mxu0 0
    %443 = vmatpush1.bf16.msra.mxu0 0
    %444 = vmatprep.subr.bf16.mxu0 0
    %445 = vmatpush1.bf16.msra.mxu0 0
    %446 = vmatprep.mubr.bf16.mxu0 0
    %447 = vmatmul.mubr.bf16.gmra.mrb[0].mxu0 %v328
    %v448 = vpop.f32.mrb[0].mxu0
    %v449 = vadd.f32 0.0, %v448
    %v450 = vpop.f32.mrb[0].mxu0
    %v451 = vpop.f32.mrb[0].mxu0
    %v452 = vpop.f32.mrb[0].mxu0
    %453 = vdwg.mxu0
    %v454 = vadd.f32 %v413, %v449
    %v455 = vunpack.c.l.bf16 %v325
    %456 = vmatprep.subr.bf16.mxu0 0
    %457 = vmatpush1.bf16.msra.mxu0 %v249
    %458 = vmatprep.subr.bf16.mxu0 0
    %459 = vmatpush1.bf16.msra.mxu0 %v250
    %460 = vmatprep.subr.bf16.mxu0 0
    %461 = vmatpush1.bf16.msra.mxu0 0
    %462 = vmatprep.subr.bf16.mxu0 0
    %463 = vmatpush1.bf16.msra.mxu0 0
    %464 = vmatprep.subr.bf16.mxu0 0
    %465 = vmatpush1.bf16.msra.mxu0 0
    %466 = vmatprep.subr.bf16.mxu0 0
    %467 = vmatpush1.bf16.msra.mxu0 0
    %468 = vmatprep.subr.bf16.mxu0 0
    %469 = vmatpush1.bf16.msra.mxu0 0
    %470 = vmatprep.subr.bf16.mxu0 0
    %471 = vmatpush1.bf16.msra.mxu0 0
    %472 = vmatprep.subr.bf16.mxu0 0
    %473 = vmatpush1.bf16.msra.mxu0 0
    %474 = vmatprep.subr.bf16.mxu0 0
    %475 = vmatpush1.bf16.msra.mxu0 0
    %476 = vmatprep.subr.bf16.mxu0 0
    %477 = vmatpush1.bf16.msra.mxu0 0
    %478 = vmatprep.subr.bf16.mxu0 0
    %479 = vmatpush1.bf16.msra.mxu0 0
    %480 = vmatprep.subr.bf16.mxu0 0
    %481 = vmatpush1.bf16.msra.mxu0 0
    %482 = vmatprep.subr.bf16.mxu0 0
    %483 = vmatpush1.bf16.msra.mxu0 0
    %484 = vmatprep.subr.bf16.mxu0 0
    %485 = vmatpush1.bf16.msra.mxu0 0
    %486 = vmatprep.subr.bf16.mxu0 0
    %487 = vmatpush1.bf16.msra.mxu0 0
    %488 = vmatprep.mubr.bf16.mxu0 0
    %489 = vmatmul.mubr.bf16.gmra.mrb[0].mxu0 %v328
    %v490 = vpop.f32.mrb[0].mxu0
    %v491 = vadd.f32 0.0, %v490
    %v492 = vpop.f32.mrb[0].mxu0
    %v493 = vpop.f32.mrb[0].mxu0
    %v494 = vpop.f32.mrb[0].mxu0
    %495 = vdwg.mxu0
    %v496 = vadd.f32 %v455, %v491
    %v497 = vmul.f32 %v370, 0.5
    %v498 = vtanh.pop %v497
    %v499 = vmul.f32 %v498, 0.5
    %v500 = vadd.f32 %v499, 0.5
    %v501 = vmul.f32 %v412, 0.5
    %v502 = vtanh.pop %v501
    %v503 = vmul.f32 %v502, 0.5
    %v504 = vadd.f32 %v503, 0.5
    %v505 = vmul.f32 %v496, 0.5
    %v506 = vtanh.pop %v505
    %v507 = vmul.f32 %v506, 0.5
    %v508 = vadd.f32 %v507, 0.5
    %v509 = vtanh.pop %v454
    %v510 = vmul.f32 %v504, %v319
    %v511 = vmul.f32 %v500, %v509
    %v512 = vadd.f32 %v510, %v511
    %v513 = vtanh.pop %v512
    %v514 = vmul.f32 %v508, %v513
    %515 = vst.msk [vmem:[#allocation3] sm:$0x3] %vm312, %v512
    %516 = vst.msk [vmem:[#allocation2] sm:$0x3] %vm312, %v514
    %v517 = vpack.c.bf16 %v514, %v514
    %s518 = scalar_lea.vmem [#allocation9], 1
    %519 = vst.msk [vmem:[%s518] sm:$0x1] %vm316, %v517
    %v520 = vld [vmem:[#allocation2] sm:$0x3]
    %v521 = vld [vmem:[#allocation3] sm:$0x3]
    %v522 = vpack.c.bf16 %v520, %v520
    %s523 = scalar_lea.vmem [#allocation4], 8
    %v524 = vld [vmem:[%s523] sm:$0x1]
    %v525 = vld [vmem:[%s523 + $0x1] sm:$0x1]
    %v526 = vld [vmem:[%s523 + $0x2] sm:$0x1]
    %v527 = vld [vmem:[%s523 + $0x3] sm:$0x1]
    %v528 = vunpack.c.l.bf16 %v524
    %v530 = vsel %vm87, %v522, 0
    %532 = vmatprep.subr.bf16.mxu0 0
    %533 = vmatpush1.bf16.msra.mxu0 %v83
    %534 = vmatprep.subr.bf16.mxu0 0
    %535 = vmatpush1.bf16.msra.mxu0 %v84
    %536 = vmatprep.subr.bf16.mxu0 0
    %537 = vmatpush1.bf16.msra.mxu0 0
    %538 = vmatprep.subr.bf16.mxu0 0
    %539 = vmatpush1.bf16.msra.mxu0 0
    %540 = vmatprep.subr.bf16.mxu0 0
    %541 = vmatpush1.bf16.msra.mxu0 0
    %542 = vmatprep.subr.bf16.mxu0 0
    %543 = vmatpush1.bf16.msra.mxu0 0
    %544 = vmatprep.subr.bf16.mxu0 0
    %545 = vmatpush1.bf16.msra.mxu0 0
    %546 = vmatprep.subr.bf16.mxu0 0
    %547 = vmatpush1.bf16.msra.mxu0 0
    %548 = vmatprep.subr.bf16.mxu0 0
    %549 = vmatpush1.bf16.msra.mxu0 0
    %550 = vmatprep.subr.bf16.mxu0 0
    %551 = vmatpush1.bf16.msra.mxu0 0
    %552 = vmatprep.subr.bf16.mxu0 0
    %553 = vmatpush1.bf16.msra.mxu0 0
    %554 = vmatprep.subr.bf16.mxu0 0
    %555 = vmatpush1.bf16.msra.mxu0 0
    %556 = vmatprep.subr.bf16.mxu0 0
    %557 = vmatpush1.bf16.msra.mxu0 0
    %558 = vmatprep.subr.bf16.mxu0 0
    %559 = vmatpush1.bf16.msra.mxu0 0
    %560 = vmatprep.subr.bf16.mxu0 0
    %561 = vmatpush1.bf16.msra.mxu0 0
    %562 = vmatprep.subr.bf16.mxu0 0
    %563 = vmatpush1.bf16.msra.mxu0 0
    %564 = vmatprep.mubr.bf16.mxu0 0
    %565 = vmatmul.mubr.bf16.gmra.mrb[0].mxu0 %v530
    %v566 = vpop.f32.mrb[0].mxu0
    %v567 = vadd.f32 0.0, %v566
    %v568 = vpop.f32.mrb[0].mxu0
    %v569 = vpop.f32.mrb[0].mxu0
    %v570 = vpop.f32.mrb[0].mxu0
    %571 = vdwg.mxu0
    %v572 = vadd.f32 %v528, %v567
    %v573 = vunpack.c.l.bf16 %v525
    %574 = vmatprep.subr.bf16.mxu0 0
    %575 = vmatpush1.bf16.msra.mxu0 %v141
    %576 = vmatprep.subr.bf16.mxu0 0
    %577 = vmatpush1.bf16.msra.mxu0 %v142
    %578 = vmatprep.subr.bf16.mxu0 0
    %579 = vmatpush1.bf16.msra.mxu0 0
    %580 = vmatprep.subr.bf16.mxu0 0
    %581 = vmatpush1.bf16.msra.mxu0 0
    %582 = vmatprep.subr.bf16.mxu0 0
    %583 = vmatpush1.bf16.msra.mxu0 0
    %584 = vmatprep.subr.bf16.mxu0 0
    %585 = vmatpush1.bf16.msra.mxu0 0
    %586 = vmatprep.subr.bf16.mxu0 0
    %587 = vmatpush1.bf16.msra.mxu0 0
    %588 = vmatprep.subr.bf16.mxu0 0
    %589 = vmatpush1.bf16.msra.mxu0 0
    %590 = vmatprep.subr.bf16.mxu0 0
    %591 = vmatpush1.bf16.msra.mxu0 0
    %592 = vmatprep.subr.bf16.mxu0 0
    %593 = vmatpush1.bf16.msra.mxu0 0
    %594 = vmatprep.subr.bf16.mxu0 0
    %595 = vmatpush1.bf16.msra.mxu0 0
    %596 = vmatprep.subr.bf16.mxu0 0
    %597 = vmatpush1.bf16.msra.mxu0 0
    %598 = vmatprep.subr.bf16.mxu0 0
    %599 = vmatpush1.bf16.msra.mxu0 0
    %600 = vmatprep.subr.bf16.mxu0 0
    %601 = vmatpush1.bf16.msra.mxu0 0
    %602 = vmatprep.subr.bf16.mxu0 0
    %603 = vmatpush1.bf16.msra.mxu0 0
    %604 = vmatprep.subr.bf16.mxu0 0
    %605 = vmatpush1.bf16.msra.mxu0 0
    %606 = vmatprep.mubr.bf16.mxu0 0
    %607 = vmatmul.mubr.bf16.gmra.mrb[0].mxu0 %v530
    %v608 = vpop.f32.mrb[0].mxu0
    %v609 = vadd.f32 0.0, %v608
    %v610 = vpop.f32.mrb[0].mxu0
    %v611 = vpop.f32.mrb[0].mxu0
    %v612 = vpop.f32.mrb[0].mxu0
    %613 = vdwg.mxu0
    %v614 = vadd.f32 %v573, %v609
    %v615 = vunpack.c.l.bf16 %v526
    %616 = vmatprep.subr.bf16.mxu0 0
    %617 = vmatpush1.bf16.msra.mxu0 %v195
    %618 = vmatprep.subr.bf16.mxu0 0
    %619 = vmatpush1.bf16.msra.mxu0 %v196
    %620 = vmatprep.subr.bf16.mxu0 0
    %621 = vmatpush1.bf16.msra.mxu0 0
    %622 = vmatprep.subr.bf16.mxu0 0
    %623 = vmatpush1.bf16.msra.mxu0 0
    %624 = vmatprep.subr.bf16.mxu0 0
    %625 = vmatpush1.bf16.msra.mxu0 0
    %626 = vmatprep.subr.bf16.mxu0 0
    %627 = vmatpush1.bf16.msra.mxu0 0
    %628 = vmatprep.subr.bf16.mxu0 0
    %629 = vmatpush1.bf16.msra.mxu0 0
    %630 = vmatprep.subr.bf16.mxu0 0
    %631 = vmatpush1.bf16.msra.mxu0 0
    %632 = vmatprep.subr.bf16.mxu0 0
    %633 = vmatpush1.bf16.msra.mxu0 0
    %634 = vmatprep.subr.bf16.mxu0 0
    %635 = vmatpush1.bf16.msra.mxu0 0
    %636 = vmatprep.subr.bf16.mxu0 0
    %637 = vmatpush1.bf16.msra.mxu0 0
    %638 = vmatprep.subr.bf16.mxu0 0
    %639 = vmatpush1.bf16.msra.mxu0 0
    %640 = vmatprep.subr.bf16.mxu0 0
    %641 = vmatpush1.bf16.msra.mxu0 0
    %642 = vmatprep.subr.bf16.mxu0 0
    %643 = vmatpush1.bf16.msra.mxu0 0
    %644 = vmatprep.subr.bf16.mxu0 0
    %645 = vmatpush1.bf16.msra.mxu0 0
    %646 = vmatprep.subr.bf16.mxu0 0
    %647 = vmatpush1.bf16.msra.mxu0 0
    %648 = vmatprep.mubr.bf16.mxu0 0
    %649 = vmatmul.mubr.bf16.gmra.mrb[0].mxu0 %v530
    %v650 = vpop.f32.mrb[0].mxu0
    %v651 = vadd.f32 0.0, %v650
    %v652 = vpop.f32.mrb[0].mxu0
    %v653 = vpop.f32.mrb[0].mxu0
    %v654 = vpop.f32.mrb[0].mxu0
    %655 = vdwg.mxu0
    %v656 = vadd.f32 %v615, %v651
    %v657 = vunpack.c.l.bf16 %v527
    %658 = vmatprep.subr.bf16.mxu0 0
    %659 = vmatpush1.bf16.msra.mxu0 %v249
    %660 = vmatprep.subr.bf16.mxu0 0
    %661 = vmatpush1.bf16.msra.mxu0 %v250
    %662 = vmatprep.subr.bf16.mxu0 0
    %663 = vmatpush1.bf16.msra.mxu0 0
    %664 = vmatprep.subr.bf16.mxu0 0
    %665 = vmatpush1.bf16.msra.mxu0 0
    %666 = vmatprep.subr.bf16.mxu0 0
    %667 = vmatpush1.bf16.msra.mxu0 0
    %668 = vmatprep.subr.bf16.mxu0 0
    %669 = vmatpush1.bf16.msra.mxu0 0
    %670 = vmatprep.subr.bf16.mxu0 0
    %671 = vmatpush1.bf16.msra.mxu0 0
    %672 = vmatprep.subr.bf16.mxu0 0
    %673 = vmatpush1.bf16.msra.mxu0 0
    %674 = vmatprep.subr.bf16.mxu0 0
    %675 = vmatpush1.bf16.msra.mxu0 0
    %676 = vmatprep.subr.bf16.mxu0 0
    %677 = vmatpush1.bf16.msra.mxu0 0
    %678 = vmatprep.subr.bf16.mxu0 0
    %679 = vmatpush1.bf16.msra.mxu0 0
    %680 = vmatprep.subr.bf16.mxu0 0
    %681 = vmatpush1.bf16.msra.mxu0 0
    %682 = vmatprep.subr.bf16.mxu0 0
    %683 = vmatpush1.bf16.msra.mxu0 0
    %684 = vmatprep.subr.bf16.mxu0 0
    %685 = vmatpush1.bf16.msra.mxu0 0
    %686 = vmatprep.subr.bf16.mxu0 0
    %687 = vmatpush1.bf16.msra.mxu0 0
    %688 = vmatprep.subr.bf16.mxu0 0
    %689 = vmatpush1.bf16.msra.mxu0 0
    %690 = vmatprep.mubr.bf16.mxu0 0
    %691 = vmatmul.mubr.bf16.gmra.mrb[0].mxu0 %v530
    %v692 = vpop.f32.mrb[0].mxu0
    %v693 = vadd.f32 0.0, %v692
    %v694 = vpop.f32.mrb[0].mxu0
    %v695 = vpop.f32.mrb[0].mxu0
    %v696 = vpop.f32.mrb[0].mxu0
    %697 = vdwg.mxu0
    %v698 = vadd.f32 %v657, %v693
    %v699 = vmul.f32 %v572, 0.5
    %v700 = vtanh.pop %v699
    %v701 = vmul.f32 %v700, 0.5
    %v702 = vadd.f32 %v701, 0.5
    %v703 = vmul.f32 %v614, 0.5
    %v704 = vtanh.pop %v703
    %v705 = vmul.f32 %v704, 0.5
    %v706 = vadd.f32 %v705, 0.5
    %v707 = vmul.f32 %v698, 0.5
    %v708 = vtanh.pop %v707
    %v709 = vmul.f32 %v708, 0.5
    %v710 = vadd.f32 %v709, 0.5
    %v711 = vtanh.pop %v656
    %v712 = vmul.f32 %v706, %v521
    %v713 = vmul.f32 %v702, %v711
    %v714 = vadd.f32 %v712, %v713
    %v715 = vtanh.pop %v714
    %v716 = vmul.f32 %v710, %v715
    %717 = vst.msk [vmem:[#allocation3] sm:$0x3] %vm312, %v714
    %718 = vst.msk [vmem:[#allocation2] sm:$0x3] %vm312, %v716
    %v719 = vpack.c.bf16 %v716, %v716
    %s720 = scalar_lea.vmem [#allocation9], 2
    %721 = vst.msk [vmem:[%s720] sm:$0x1] %vm316, %v719
    %v722 = vld [vmem:[#allocation2] sm:$0x3]
    %v723 = vld [vmem:[#allocation3] sm:$0x3]
    %v724 = vpack.c.bf16 %v722, %v722
    %s725 = scalar_lea.vmem [#allocation4], 12
    %v726 = vld [vmem:[%s725] sm:$0x1]
    %v727 = vld [vmem:[%s725 + $0x1] sm:$0x1]
    %v728 = vld [vmem:[%s725 + $0x2] sm:$0x1]
    %v729 = vld [vmem:[%s725 + $0x3] sm:$0x1]
    %v730 = vunpack.c.l.bf16 %v726
    %v732 = vsel %vm87, %v724, 0
    %734 = vmatprep.subr.bf16.mxu0 0
    %735 = vmatpush1.bf16.msra.mxu0 %v83
    %736 = vmatprep.subr.bf16.mxu0 0
    %737 = vmatpush1.bf16.msra.mxu0 %v84
    %738 = vmatprep.subr.bf16.mxu0 0
    %739 = vmatpush1.bf16.msra.mxu0 0
    %740 = vmatprep.subr.bf16.mxu0 0
    %741 = vmatpush1.bf16.msra.mxu0 0
    %742 = vmatprep.subr.bf16.mxu0 0
    %743 = vmatpush1.bf16.msra.mxu0 0
    %744 = vmatprep.subr.bf16.mxu0 0
    %745 = vmatpush1.bf16.msra.mxu0 0
    %746 = vmatprep.subr.bf16.mxu0 0
    %747 = vmatpush1.bf16.msra.mxu0 0
    %748 = vmatprep.subr.bf16.mxu0 0
    %749 = vmatpush1.bf16.msra.mxu0 0
    %750 = vmatprep.subr.bf16.mxu0 0
    %751 = vmatpush1.bf16.msra.mxu0 0
    %752 = vmatprep.subr.bf16.mxu0 0
    %753 = vmatpush1.bf16.msra.mxu0 0
    %754 = vmatprep.subr.bf16.mxu0 0
    %755 = vmatpush1.bf16.msra.mxu0 0
    %756 = vmatprep.subr.bf16.mxu0 0
    %757 = vmatpush1.bf16.msra.mxu0 0
    %758 = vmatprep.subr.bf16.mxu0 0
    %759 = vmatpush1.bf16.msra.mxu0 0
    %760 = vmatprep.subr.bf16.mxu0 0
    %761 = vmatpush1.bf16.msra.mxu0 0
    %762 = vmatprep.subr.bf16.mxu0 0
    %763 = vmatpush1.bf16.msra.mxu0 0
    %764 = vmatprep.subr.bf16.mxu0 0
    %765 = vmatpush1.bf16.msra.mxu0 0
    %766 = vmatprep.mubr.bf16.mxu0 0
    %767 = vmatmul.mubr.bf16.gmra.mrb[0].mxu0 %v732
    %v768 = vpop.f32.mrb[0].mxu0
    %v769 = vadd.f32 0.0, %v768
    %v770 = vpop.f32.mrb[0].mxu0
    %v771 = vpop.f32.mrb[0].mxu0
    %v772 = vpop.f32.mrb[0].mxu0
    %773 = vdwg.mxu0
    %v774 = vadd.f32 %v730, %v769
    %v775 = vunpack.c.l.bf16 %v727
    %776 = vmatprep.subr.bf16.mxu0 0
    %777 = vmatpush1.bf16.msra.mxu0 %v141
    %778 = vmatprep.subr.bf16.mxu0 0
    %779 = vmatpush1.bf16.msra.mxu0 %v142
    %780 = vmatprep.subr.bf16.mxu0 0
    %781 = vmatpush1.bf16.msra.mxu0 0
    %782 = vmatprep.subr.bf16.mxu0 0
    %783 = vmatpush1.bf16.msra.mxu0 0
    %784 = vmatprep.subr.bf16.mxu0 0
    %785 = vmatpush1.bf16.msra.mxu0 0
    %786 = vmatprep.subr.bf16.mxu0 0
    %787 = vmatpush1.bf16.msra.mxu0 0
    %788 = vmatprep.subr.bf16.mxu0 0
    %789 = vmatpush1.bf16.msra.mxu0 0
    %790 = vmatprep.subr.bf16.mxu0 0
    %791 = vmatpush1.bf16.msra.mxu0 0
    %792 = vmatprep.subr.bf16.mxu0 0
    %793 = vmatpush1.bf16.msra.mxu0 0
    %794 = vmatprep.subr.bf16.mxu0 0
    %795 = vmatpush1.bf16.msra.mxu0 0
    %796 = vmatprep.subr.bf16.mxu0 0
    %797 = vmatpush1.bf16.msra.mxu0 0
    %798 = vmatprep.subr.bf16.mxu0 0
    %799 = vmatpush1.bf16.msra.mxu0 0
    %800 = vmatprep.subr.bf16.mxu0 0
    %801 = vmatpush1.bf16.msra.mxu0 0
    %802 = vmatprep.subr.bf16.mxu0 0
    %803 = vmatpush1.bf16.msra.mxu0 0
    %804 = vmatprep.subr.bf16.mxu0 0
    %805 = vmatpush1.bf16.msra.mxu0 0
    %806 = vmatprep.subr.bf16.mxu0 0
    %807 = vmatpush1.bf16.msra.mxu0 0
    %808 = vmatprep.mubr.bf16.mxu0 0
    %809 = vmatmul.mubr.bf16.gmra.mrb[0].mxu0 %v732
    %v810 = vpop.f32.mrb[0].mxu0
    %v811 = vadd.f32 0.0, %v810
    %v812 = vpop.f32.mrb[0].mxu0
    %v813 = vpop.f32.mrb[0].mxu0
    %v814 = vpop.f32.mrb[0].mxu0
    %815 = vdwg.mxu0
    %v816 = vadd.f32 %v775, %v811
    %v817 = vunpack.c.l.bf16 %v728
    %818 = vmatprep.subr.bf16.mxu0 0
    %819 = vmatpush1.bf16.msra.mxu0 %v195
    %820 = vmatprep.subr.bf16.mxu0 0
    %821 = vmatpush1.bf16.msra.mxu0 %v196
    %822 = vmatprep.subr.bf16.mxu0 0
    %823 = vmatpush1.bf16.msra.mxu0 0
    %824 = vmatprep.subr.bf16.mxu0 0
    %825 = vmatpush1.bf16.msra.mxu0 0
    %826 = vmatprep.subr.bf16.mxu0 0
    %827 = vmatpush1.bf16.msra.mxu0 0
    %828 = vmatprep.subr.bf16.mxu0 0
    %829 = vmatpush1.bf16.msra.mxu0 0
    %830 = vmatprep.subr.bf16.mxu0 0
    %831 = vmatpush1.bf16.msra.mxu0 0
    %832 = vmatprep.subr.bf16.mxu0 0
    %833 = vmatpush1.bf16.msra.mxu0 0
    %834 = vmatprep.subr.bf16.mxu0 0
    %835 = vmatpush1.bf16.msra.mxu0 0
    %836 = vmatprep.subr.bf16.mxu0 0
    %837 = vmatpush1.bf16.msra.mxu0 0
    %838 = vmatprep.subr.bf16.mxu0 0
    %839 = vmatpush1.bf16.msra.mxu0 0
    %840 = vmatprep.subr.bf16.mxu0 0
    %841 = vmatpush1.bf16.msra.mxu0 0
    %842 = vmatprep.subr.bf16.mxu0 0
    %843 = vmatpush1.bf16.msra.mxu0 0
    %844 = vmatprep.subr.bf16.mxu0 0
    %845 = vmatpush1.bf16.msra.mxu0 0
    %846 = vmatprep.subr.bf16.mxu0 0
    %847 = vmatpush1.bf16.msra.mxu0 0
    %848 = vmatprep.subr.bf16.mxu0 0
    %849 = vmatpush1.bf16.msra.mxu0 0
    %850 = vmatprep.mubr.bf16.mxu0 0
    %851 = vmatmul.mubr.bf16.gmra.mrb[0].mxu0 %v732
    %v852 = vpop.f32.mrb[0].mxu0
    %v853 = vadd.f32 0.0, %v852
    %v854 = vpop.f32.mrb[0].mxu0
    %v855 = vpop.f32.mrb[0].mxu0
    %v856 = vpop.f32.mrb[0].mxu0
    %857 = vdwg.mxu0
    %v858 = vadd.f32 %v817, %v853
    %v859 = vunpack.c.l.bf16 %v729
    %860 = vmatprep.subr.bf16.mxu0 0
    %861 = vmatpush1.bf16.msra.mxu0 %v249
    %862 = vmatprep.subr.bf16.mxu0 0
    %863 = vmatpush1.bf16.msra.mxu0 %v250
    %864 = vmatprep.subr.bf16.mxu0 0
    %865 = vmatpush1.bf16.msra.mxu0 0
    %866 = vmatprep.subr.bf16.mxu0 0
    %867 = vmatpush1.bf16.msra.mxu0 0
    %868 = vmatprep.subr.bf16.mxu0 0
    %869 = vmatpush1.bf16.msra.mxu0 0
    %870 = vmatprep.subr.bf16.mxu0 0
    %871 = vmatpush1.bf16.msra.mxu0 0
    %872 = vmatprep.subr.bf16.mxu0 0
    %873 = vmatpush1.bf16.msra.mxu0 0
    %874 = vmatprep.subr.bf16.mxu0 0
    %875 = vmatpush1.bf16.msra.mxu0 0
    %876 = vmatprep.subr.bf16.mxu0 0
    %877 = vmatpush1.bf16.msra.mxu0 0
    %878 = vmatprep.subr.bf16.mxu0 0
    %879 = vmatpush1.bf16.msra.mxu0 0
    %880 = vmatprep.subr.bf16.mxu0 0
    %881 = vmatpush1.bf16.msra.mxu0 0
    %882 = vmatprep.subr.bf16.mxu0 0
    %883 = vmatpush1.bf16.msra.mxu0 0
    %884 = vmatprep.subr.bf16.mxu0 0
    %885 = vmatpush1.bf16.msra.mxu0 0
    %886 = vmatprep.subr.bf16.mxu0 0
    %887 = vmatpush1.bf16.msra.mxu0 0
    %888 = vmatprep.subr.bf16.mxu0 0
    %889 = vmatpush1.bf16.msra.mxu0 0
    %890 = vmatprep.subr.bf16.mxu0 0
    %891 = vmatpush1.bf16.msra.mxu0 0
    %892 = vmatprep.mubr.bf16.mxu0 0
    %893 = vmatmul.mubr.bf16.gmra.mrb[0].mxu0 %v732
    %v894 = vpop.f32.mrb[0].mxu0
    %v895 = vadd.f32 0.0, %v894
    %v896 = vpop.f32.mrb[0].mxu0
    %v897 = vpop.f32.mrb[0].mxu0
    %v898 = vpop.f32.mrb[0].mxu0
    %899 = vdwg.mxu0
    %v900 = vadd.f32 %v859, %v895
    %v901 = vmul.f32 %v774, 0.5
    %v902 = vtanh.pop %v901
    %v903 = vmul.f32 %v902, 0.5
    %v904 = vadd.f32 %v903, 0.5
    %v905 = vmul.f32 %v816, 0.5
    %v906 = vtanh.pop %v905
    %v907 = vmul.f32 %v906, 0.5
    %v908 = vadd.f32 %v907, 0.5
    %v909 = vmul.f32 %v900, 0.5
    %v910 = vtanh.pop %v909
    %v911 = vmul.f32 %v910, 0.5
    %v912 = vadd.f32 %v911, 0.5
    %v913 = vtanh.pop %v858
    %v914 = vmul.f32 %v908, %v723
    %v915 = vmul.f32 %v904, %v913
    %v916 = vadd.f32 %v914, %v915
    %v917 = vtanh.pop %v916
    %v918 = vmul.f32 %v912, %v917
    %919 = vst.msk [vmem:[#allocation3] sm:$0x3] %vm312, %v916
    %920 = vst.msk [vmem:[#allocation2] sm:$0x3] %vm312, %v918
    %v921 = vpack.c.bf16 %v918, %v918
    %s922 = scalar_lea.vmem [#allocation9], 3
    %923 = vst.msk [vmem:[%s922] sm:$0x1] %vm316, %v921
    %v924 = vld [vmem:[#allocation2] sm:$0x3]
    %v925 = vld [vmem:[#allocation3] sm:$0x3]
    %v926 = vpack.c.bf16 %v924, %v924
    %s927 = scalar_lea.vmem [#allocation4], 16
    %v928 = vld [vmem:[%s927] sm:$0x1]
    %v929 = vld [vmem:[%s927 + $0x1] sm:$0x1]
    %v930 = vld [vmem:[%s927 + $0x2] sm:$0x1]
    %v931 = vld [vmem:[%s927 + $0x3] sm:$0x1]
    %v932 = vunpack.c.l.bf16 %v928
    %v934 = vsel %vm87, %v926, 0
    %936 = vmatprep.subr.bf16.mxu0 0
    %937 = vmatpush1.bf16.msra.mxu0 %v83
    %938 = vmatprep.subr.bf16.mxu0 0
    %939 = vmatpush1.bf16.msra.mxu0 %v84
    %940 = vmatprep.subr.bf16.mxu0 0
    %941 = vmatpush1.bf16.msra.mxu0 0
    %942 = vmatprep.subr.bf16.mxu0 0
    %943 = vmatpush1.bf16.msra.mxu0 0
    %944 = vmatprep.subr.bf16.mxu0 0
    %945 = vmatpush1.bf16.msra.mxu0 0
    %946 = vmatprep.subr.bf16.mxu0 0
    %947 = vmatpush1.bf16.msra.mxu0 0
    %948 = vmatprep.subr.bf16.mxu0 0
    %949 = vmatpush1.bf16.msra.mxu0 0
    %950 = vmatprep.subr.bf16.mxu0 0
    %951 = vmatpush1.bf16.msra.mxu0 0
    %952 = vmatprep.subr.bf16.mxu0 0
    %953 = vmatpush1.bf16.msra.mxu0 0
    %954 = vmatprep.subr.bf16.mxu0 0
    %955 = vmatpush1.bf16.msra.mxu0 0
    %956 = vmatprep.subr.bf16.mxu0 0
    %957 = vmatpush1.bf16.msra.mxu0 0
    %958 = vmatprep.subr.bf16.mxu0 0
    %959 = vmatpush1.bf16.msra.mxu0 0
    %960 = vmatprep.subr.bf16.mxu0 0
    %961 = vmatpush1.bf16.msra.mxu0 0
    %962 = vmatprep.subr.bf16.mxu0 0
    %963 = vmatpush1.bf16.msra.mxu0 0
    %964 = vmatprep.subr.bf16.mxu0 0
    %965 = vmatpush1.bf16.msra.mxu0 0
    %966 = vmatprep.subr.bf16.mxu0 0
    %967 = vmatpush1.bf16.msra.mxu0 0
    %968 = vmatprep.mubr.bf16.mxu0 0
    %969 = vmatmul.mubr.bf16.gmra.mrb[0].mxu0 %v934
    %v970 = vpop.f32.mrb[0].mxu0
    %v971 = vadd.f32 0.0, %v970
    %v972 = vpop.f32.mrb[0].mxu0
    %v973 = vpop.f32.mrb[0].mxu0
    %v974 = vpop.f32.mrb[0].mxu0
    %975 = vdwg.mxu0
    %v976 = vadd.f32 %v932, %v971
    %v977 = vunpack.c.l.bf16 %v929
    %978 = vmatprep.subr.bf16.mxu0 0
    %979 = vmatpush1.bf16.msra.mxu0 %v141
    %980 = vmatprep.subr.bf16.mxu0 0
    %981 = vmatpush1.bf16.msra.mxu0 %v142
    %982 = vmatprep.subr.bf16.mxu0 0
    %983 = vmatpush1.bf16.msra.mxu0 0
    %984 = vmatprep.subr.bf16.mxu0 0
    %985 = vmatpush1.bf16.msra.mxu0 0
    %986 = vmatprep.subr.bf16.mxu0 0
    %987 = vmatpush1.bf16.msra.mxu0 0
    %988 = vmatprep.subr.bf16.mxu0 0
    %989 = vmatpush1.bf16.msra.mxu0 0
    %990 = vmatprep.subr.bf16.mxu0 0
    %991 = vmatpush1.bf16.msra.mxu0 0
    %992 = vmatprep.subr.bf16.mxu0 0
    %993 = vmatpush1.bf16.msra.mxu0 0
    %994 = vmatprep.subr.bf16.mxu0 0
    %995 = vmatpush1.bf16.msra.mxu0 0
    %996 = vmatprep.subr.bf16.mxu0 0
    %997 = vmatpush1.bf16.msra.mxu0 0
    %998 = vmatprep.subr.bf16.mxu0 0
    %999 = vmatpush1.bf16.msra.mxu0 0
    %1000 = vmatprep.subr.bf16.mxu0 0
    %1001 = vmatpush1.bf16.msra.mxu0 0
    %1002 = vmatprep.subr.bf16.mxu0 0
    %1003 = vmatpush1.bf16.msra.mxu0 0
    %1004 = vmatprep.subr.bf16.mxu0 0
    %1005 = vmatpush1.bf16.msra.mxu0 0
    %1006 = vmatprep.subr.bf16.mxu0 0
    %1007 = vmatpush1.bf16.msra.mxu0 0
    %1008 = vmatprep.subr.bf16.mxu0 0
    %1009 = vmatpush1.bf16.msra.mxu0 0
    %1010 = vmatprep.mubr.bf16.mxu0 0
    %1011 = vmatmul.mubr.bf16.gmra.mrb[0].mxu0 %v934
    %v1012 = vpop.f32.mrb[0].mxu0
    %v1013 = vadd.f32 0.0, %v1012
    %v1014 = vpop.f32.mrb[0].mxu0
    %v1015 = vpop.f32.mrb[0].mxu0
    %v1016 = vpop.f32.mrb[0].mxu0
    %1017 = vdwg.mxu0
    %v1018 = vadd.f32 %v977, %v1013
    %v1019 = vunpack.c.l.bf16 %v930
    %1020 = vmatprep.subr.bf16.mxu0 0
    %1021 = vmatpush1.bf16.msra.mxu0 %v195
    %1022 = vmatprep.subr.bf16.mxu0 0
    %1023 = vmatpush1.bf16.msra.mxu0 %v196
    %1024 = vmatprep.subr.bf16.mxu0 0
    %1025 = vmatpush1.bf16.msra.mxu0 0
    %1026 = vmatprep.subr.bf16.mxu0 0
    %1027 = vmatpush1.bf16.msra.mxu0 0
    %1028 = vmatprep.subr.bf16.mxu0 0
    %1029 = vmatpush1.bf16.msra.mxu0 0
    %1030 = vmatprep.subr.bf16.mxu0 0
    %1031 = vmatpush1.bf16.msra.mxu0 0
    %1032 = vmatprep.subr.bf16.mxu0 0
    %1033 = vmatpush1.bf16.msra.mxu0 0
    %1034 = vmatprep.subr.bf16.mxu0 0
    %1035 = vmatpush1.bf16.msra.mxu0 0
    %1036 = vmatprep.subr.bf16.mxu0 0
    %1037 = vmatpush1.bf16.msra.mxu0 0
    %1038 = vmatprep.subr.bf16.mxu0 0
    %1039 = vmatpush1.bf16.msra.mxu0 0
    %1040 = vmatprep.subr.bf16.mxu0 0
    %1041 = vmatpush1.bf16.msra.mxu0 0
    %1042 = vmatprep.subr.bf16.mxu0 0
    %1043 = vmatpush1.bf16.msra.mxu0 0
    %1044 = vmatprep.subr.bf16.mxu0 0
    %1045 = vmatpush1.bf16.msra.mxu0 0
    %1046 = vmatprep.subr.bf16.mxu0 0
    %1047 = vmatpush1.bf16.msra.mxu0 0
    %1048 = vmatprep.subr.bf16.mxu0 0
    %1049 = vmatpush1.bf16.msra.mxu0 0
    %1050 = vmatprep.subr.bf16.mxu0 0
    %1051 = vmatpush1.bf16.msra.mxu0 0
    %1052 = vmatprep.mubr.bf16.mxu0 0
    %1053 = vmatmul.mubr.bf16.gmra.mrb[0].mxu0 %v934
    %v1054 = vpop.f32.mrb[0].mxu0
    %v1055 = vadd.f32 0.0, %v1054
    %v1056 = vpop.f32.mrb[0].mxu0
    %v1057 = vpop.f32.mrb[0].mxu0
    %v1058 = vpop.f32.mrb[0].mxu0
    %1059 = vdwg.mxu0
    %v1060 = vadd.f32 %v1019, %v1055
    %v1061 = vunpack.c.l.bf16 %v931
    %1062 = vmatprep.subr.bf16.mxu0 0
    %1063 = vmatpush1.bf16.msra.mxu0 %v249
    %1064 = vmatprep.subr.bf16.mxu0 0
    %1065 = vmatpush1.bf16.msra.mxu0 %v250
    %1066 = vmatprep.subr.bf16.mxu0 0
    %1067 = vmatpush1.bf16.msra.mxu0 0
    %1068 = vmatprep.subr.bf16.mxu0 0
    %1069 = vmatpush1.bf16.msra.mxu0 0
    %1070 = vmatprep.subr.bf16.mxu0 0
    %1071 = vmatpush1.bf16.msra.mxu0 0
    %1072 = vmatprep.subr.bf16.mxu0 0
    %1073 = vmatpush1.bf16.msra.mxu0 0
    %1074 = vmatprep.subr.bf16.mxu0 0
    %1075 = vmatpush1.bf16.msra.mxu0 0
    %1076 = vmatprep.subr.bf16.mxu0 0
    %1077 = vmatpush1.bf16.msra.mxu0 0
    %1078 = vmatprep.subr.bf16.mxu0 0
    %1079 = vmatpush1.bf16.msra.mxu0 0
    %1080 = vmatprep.subr.bf16.mxu0 0
    %1081 = vmatpush1.bf16.msra.mxu0 0
    %1082 = vmatprep.subr.bf16.mxu0 0
    %1083 = vmatpush1.bf16.msra.mxu0 0
    %1084 = vmatprep.subr.bf16.mxu0 0
    %1085 = vmatpush1.bf16.msra.mxu0 0
    %1086 = vmatprep.subr.bf16.mxu0 0
    %1087 = vmatpush1.bf16.msra.mxu0 0
    %1088 = vmatprep.subr.bf16.mxu0 0
    %1089 = vmatpush1.bf16.msra.mxu0 0
    %1090 = vmatprep.subr.bf16.mxu0 0
    %1091 = vmatpush1.bf16.msra.mxu0 0
    %1092 = vmatprep.subr.bf16.mxu0 0
    %1093 = vmatpush1.bf16.msra.mxu0 0
    %1094 = vmatprep.mubr.bf16.mxu0 0
    %1095 = vmatmul.mubr.bf16.gmra.mrb[0].mxu0 %v934
    %v1096 = vpop.f32.mrb[0].mxu0
    %v1097 = vadd.f32 0.0, %v1096
    %v1098 = vpop.f32.mrb[0].mxu0
    %v1099 = vpop.f32.mrb[0].mxu0
    %v1100 = vpop.f32.mrb[0].mxu0
    %1101 = vdwg.mxu0
    %v1102 = vadd.f32 %v1061, %v1097
    %v1103 = vmul.f32 %v976, 0.5
    %v1104 = vtanh.pop %v1103
    %v1105 = vmul.f32 %v1104, 0.5
    %v1106 = vadd.f32 %v1105, 0.5
    %v1107 = vmul.f32 %v1018, 0.5
    %v1108 = vtanh.pop %v1107
    %v1109 = vmul.f32 %v1108, 0.5
    %v1110 = vadd.f32 %v1109, 0.5
    %v1111 = vmul.f32 %v1102, 0.5
    %v1112 = vtanh.pop %v1111
    %v1113 = vmul.f32 %v1112, 0.5
    %v1114 = vadd.f32 %v1113, 0.5
    %v1115 = vtanh.pop %v1060
    %v1116 = vmul.f32 %v1110, %v925
    %v1117 = vmul.f32 %v1106, %v1115
    %v1118 = vadd.f32 %v1116, %v1117
    %v1119 = vtanh.pop %v1118
    %v1120 = vmul.f32 %v1114, %v1119
    %1121 = vst.msk [vmem:[#allocation3] sm:$0x3] %vm312, %v1118
    %1122 = vst.msk [vmem:[#allocation2] sm:$0x3] %vm312, %v1120
    %v1123 = vpack.c.bf16 %v1120, %v1120
    %s1124 = scalar_lea.vmem [#allocation9], 4
    %1125 = vst.msk [vmem:[%s1124] sm:$0x1] %vm316, %v1123
    %v1126 = vld [vmem:[#allocation2] sm:$0x3]
    %v1127 = vld [vmem:[#allocation3] sm:$0x3]
    %v1128 = vpack.c.bf16 %v1126, %v1126
    %s1129 = scalar_lea.vmem [#allocation4], 20
    %v1130 = vld [vmem:[%s1129] sm:$0x1]
    %v1131 = vld [vmem:[%s1129 + $0x1] sm:$0x1]
    %v1132 = vld [vmem:[%s1129 + $0x2] sm:$0x1]
    %v1133 = vld [vmem:[%s1129 + $0x3] sm:$0x1]
    %v1134 = vunpack.c.l.bf16 %v1130
    %v1136 = vsel %vm87, %v1128, 0
    %1138 = vmatprep.subr.bf16.mxu0 0
    %1139 = vmatpush1.bf16.msra.mxu0 %v83
    %1140 = vmatprep.subr.bf16.mxu0 0
    %1141 = vmatpush1.bf16.msra.mxu0 %v84
    %1142 = vmatprep.subr.bf16.mxu0 0
    %1143 = vmatpush1.bf16.msra.mxu0 0
    %1144 = vmatprep.subr.bf16.mxu0 0
    %1145 = vmatpush1.bf16.msra.mxu0 0
    %1146 = vmatprep.subr.bf16.mxu0 0
    %1147 = vmatpush1.bf16.msra.mxu0 0
    %1148 = vmatprep.subr.bf16.mxu0 0
    %1149 = vmatpush1.bf16.msra.mxu0 0
    %1150 = vmatprep.subr.bf16.mxu0 0
    %1151 = vmatpush1.bf16.msra.mxu0 0
    %1152 = vmatprep.subr.bf16.mxu0 0
    %1153 = vmatpush1.bf16.msra.mxu0 0
    %1154 = vmatprep.subr.bf16.mxu0 0
    %1155 = vmatpush1.bf16.msra.mxu0 0
    %1156 = vmatprep.subr.bf16.mxu0 0
    %1157 = vmatpush1.bf16.msra.mxu0 0
    %1158 = vmatprep.subr.bf16.mxu0 0
    %1159 = vmatpush1.bf16.msra.mxu0 0
    %1160 = vmatprep.subr.bf16.mxu0 0
    %1161 = vmatpush1.bf16.msra.mxu0 0
    %1162 = vmatprep.subr.bf16.mxu0 0
    %1163 = vmatpush1.bf16.msra.mxu0 0
    %1164 = vmatprep.subr.bf16.mxu0 0
    %1165 = vmatpush1.bf16.msra.mxu0 0
    %1166 = vmatprep.subr.bf16.mxu0 0
    %1167 = vmatpush1.bf16.msra.mxu0 0
    %1168 = vmatprep.subr.bf16.mxu0 0
    %1169 = vmatpush1.bf16.msra.mxu0 0
    %1170 = vmatprep.mubr.bf16.mxu0 0
    %1171 = vmatmul.mubr.bf16.gmra.mrb[0].mxu0 %v1136
    %v1172 = vpop.f32.mrb[0].mxu0
    %v1173 = vadd.f32 0.0, %v1172
    %v1174 = vpop.f32.mrb[0].mxu0
    %v1175 = vpop.f32.mrb[0].mxu0
    %v1176 = vpop.f32.mrb[0].mxu0
    %1177 = vdwg.mxu0
    %v1178 = vadd.f32 %v1134, %v1173
    %v1179 = vunpack.c.l.bf16 %v1131
    %1180 = vmatprep.subr.bf16.mxu0 0
    %1181 = vmatpush1.bf16.msra.mxu0 %v141
    %1182 = vmatprep.subr.bf16.mxu0 0
    %1183 = vmatpush1.bf16.msra.mxu0 %v142
    %1184 = vmatprep.subr.bf16.mxu0 0
    %1185 = vmatpush1.bf16.msra.mxu0 0
    %1186 = vmatprep.subr.bf16.mxu0 0
    %1187 = vmatpush1.bf16.msra.mxu0 0
    %1188 = vmatprep.subr.bf16.mxu0 0
    %1189 = vmatpush1.bf16.msra.mxu0 0
    %1190 = vmatprep.subr.bf16.mxu0 0
    %1191 = vmatpush1.bf16.msra.mxu0 0
    %1192 = vmatprep.subr.bf16.mxu0 0
    %1193 = vmatpush1.bf16.msra.mxu0 0
    %1194 = vmatprep.subr.bf16.mxu0 0
    %1195 = vmatpush1.bf16.msra.mxu0 0
    %1196 = vmatprep.subr.bf16.mxu0 0
    %1197 = vmatpush1.bf16.msra.mxu0 0
    %1198 = vmatprep.subr.bf16.mxu0 0
    %1199 = vmatpush1.bf16.msra.mxu0 0
    %1200 = vmatprep.subr.bf16.mxu0 0
    %1201 = vmatpush1.bf16.msra.mxu0 0
    %1202 = vmatprep.subr.bf16.mxu0 0
    %1203 = vmatpush1.bf16.msra.mxu0 0
    %1204 = vmatprep.subr.bf16.mxu0 0
    %1205 = vmatpush1.bf16.msra.mxu0 0
    %1206 = vmatprep.subr.bf16.mxu0 0
    %1207 = vmatpush1.bf16.msra.mxu0 0
    %1208 = vmatprep.subr.bf16.mxu0 0
    %1209 = vmatpush1.bf16.msra.mxu0 0
    %1210 = vmatprep.subr.bf16.mxu0 0
    %1211 = vmatpush1.bf16.msra.mxu0 0
    %1212 = vmatprep.mubr.bf16.mxu0 0
    %1213 = vmatmul.mubr.bf16.gmra.mrb[0].mxu0 %v1136
    %v1214 = vpop.f32.mrb[0].mxu0
    %v1215 = vadd.f32 0.0, %v1214
    %v1216 = vpop.f32.mrb[0].mxu0
    %v1217 = vpop.f32.mrb[0].mxu0
    %v1218 = vpop.f32.mrb[0].mxu0
    %1219 = vdwg.mxu0
    %v1220 = vadd.f32 %v1179, %v1215
    %v1221 = vunpack.c.l.bf16 %v1132
    %1222 = vmatprep.subr.bf16.mxu0 0
    %1223 = vmatpush1.bf16.msra.mxu0 %v195
    %1224 = vmatprep.subr.bf16.mxu0 0
    %1225 = vmatpush1.bf16.msra.mxu0 %v196
    %1226 = vmatprep.subr.bf16.mxu0 0
    %1227 = vmatpush1.bf16.msra.mxu0 0
    %1228 = vmatprep.subr.bf16.mxu0 0
    %1229 = vmatpush1.bf16.msra.mxu0 0
    %1230 = vmatprep.subr.bf16.mxu0 0
    %1231 = vmatpush1.bf16.msra.mxu0 0
    %1232 = vmatprep.subr.bf16.mxu0 0
    %1233 = vmatpush1.bf16.msra.mxu0 0
    %1234 = vmatprep.subr.bf16.mxu0 0
    %1235 = vmatpush1.bf16.msra.mxu0 0
    %1236 = vmatprep.subr.bf16.mxu0 0
    %1237 = vmatpush1.bf16.msra.mxu0 0
    %1238 = vmatprep.subr.bf16.mxu0 0
    %1239 = vmatpush1.bf16.msra.mxu0 0
    %1240 = vmatprep.subr.bf16.mxu0 0
    %1241 = vmatpush1.bf16.msra.mxu0 0
    %1242 = vmatprep.subr.bf16.mxu0 0
    %1243 = vmatpush1.bf16.msra.mxu0 0
    %1244 = vmatprep.subr.bf16.mxu0 0
    %1245 = vmatpush1.bf16.msra.mxu0 0
    %1246 = vmatprep.subr.bf16.mxu0 0
    %1247 = vmatpush1.bf16.msra.mxu0 0
    %1248 = vmatprep.subr.bf16.mxu0 0
    %1249 = vmatpush1.bf16.msra.mxu0 0
    %1250 = vmatprep.subr.bf16.mxu0 0
    %1251 = vmatpush1.bf16.msra.mxu0 0
    %1252 = vmatprep.subr.bf16.mxu0 0
    %1253 = vmatpush1.bf16.msra.mxu0 0
    %1254 = vmatprep.mubr.bf16.mxu0 0
    %1255 = vmatmul.mubr.bf16.gmra.mrb[0].mxu0 %v1136
    %v1256 = vpop.f32.mrb[0].mxu0
    %v1257 = vadd.f32 0.0, %v1256
    %v1258 = vpop.f32.mrb[0].mxu0
    %v1259 = vpop.f32.mrb[0].mxu0
    %v1260 = vpop.f32.mrb[0].mxu0
    %1261 = vdwg.mxu0
    %v1262 = vadd.f32 %v1221, %v1257
    %v1263 = vunpack.c.l.bf16 %v1133
    %1264 = vmatprep.subr.bf16.mxu0 0
    %1265 = vmatpush1.bf16.msra.mxu0 %v249
    %1266 = vmatprep.subr.bf16.mxu0 0
    %1267 = vmatpush1.bf16.msra.mxu0 %v250
    %1268 = vmatprep.subr.bf16.mxu0 0
    %1269 = vmatpush1.bf16.msra.mxu0 0
    %1270 = vmatprep.subr.bf16.mxu0 0
    %1271 = vmatpush1.bf16.msra.mxu0 0
    %1272 = vmatprep.subr.bf16.mxu0 0
    %1273 = vmatpush1.bf16.msra.mxu0 0
    %1274 = vmatprep.subr.bf16.mxu0 0
    %1275 = vmatpush1.bf16.msra.mxu0 0
    %1276 = vmatprep.subr.bf16.mxu0 0
    %1277 = vmatpush1.bf16.msra.mxu0 0
    %1278 = vmatprep.subr.bf16.mxu0 0
    %1279 = vmatpush1.bf16.msra.mxu0 0
    %1280 = vmatprep.subr.bf16.mxu0 0
    %1281 = vmatpush1.bf16.msra.mxu0 0
    %1282 = vmatprep.subr.bf16.mxu0 0
    %1283 = vmatpush1.bf16.msra.mxu0 0
    %1284 = vmatprep.subr.bf16.mxu0 0
    %1285 = vmatpush1.bf16.msra.mxu0 0
    %1286 = vmatprep.subr.bf16.mxu0 0
    %1287 = vmatpush1.bf16.msra.mxu0 0
    %1288 = vmatprep.subr.bf16.mxu0 0
    %1289 = vmatpush1.bf16.msra.mxu0 0
    %1290 = vmatprep.subr.bf16.mxu0 0
    %1291 = vmatpush1.bf16.msra.mxu0 0
    %1292 = vmatprep.subr.bf16.mxu0 0
    %1293 = vmatpush1.bf16.msra.mxu0 0
    %1294 = vmatprep.subr.bf16.mxu0 0
    %1295 = vmatpush1.bf16.msra.mxu0 0
    %1296 = vmatprep.mubr.bf16.mxu0 0
    %1297 = vmatmul.mubr.bf16.gmra.mrb[0].mxu0 %v1136
    %v1298 = vpop.f32.mrb[0].mxu0
    %v1299 = vadd.f32 0.0, %v1298
    %v1300 = vpop.f32.mrb[0].mxu0
    %v1301 = vpop.f32.mrb[0].mxu0
    %v1302 = vpop.f32.mrb[0].mxu0
    %1303 = vdwg.mxu0
    %v1304 = vadd.f32 %v1263, %v1299
    %v1305 = vmul.f32 %v1178, 0.5
    %v1306 = vtanh.pop %v1305
    %v1307 = vmul.f32 %v1306, 0.5
    %v1308 = vadd.f32 %v1307, 0.5
    %v1309 = vmul.f32 %v1220, 0.5
    %v1310 = vtanh.pop %v1309
    %v1311 = vmul.f32 %v1310, 0.5
    %v1312 = vadd.f32 %v1311, 0.5
    %v1313 = vmul.f32 %v1304, 0.5
    %v1314 = vtanh.pop %v1313
    %v1315 = vmul.f32 %v1314, 0.5
    %v1316 = vadd.f32 %v1315, 0.5
    %v1317 = vtanh.pop %v1262
    %v1318 = vmul.f32 %v1312, %v1127
    %v1319 = vmul.f32 %v1308, %v1317
    %v1320 = vadd.f32 %v1318, %v1319
    %v1321 = vtanh.pop %v1320
    %v1322 = vmul.f32 %v1316, %v1321
    %1323 = vst.msk [vmem:[#allocation3] sm:$0x3] %vm312, %v1320
    %1324 = vst.msk [vmem:[#allocation2] sm:$0x3] %vm312, %v1322
    %v1325 = vpack.c.bf16 %v1322, %v1322
    %s1326 = scalar_lea.vmem [#allocation9], 5
    %1327 = vst.msk [vmem:[%s1326] sm:$0x1] %vm316, %v1325
    %v1328 = vld [vmem:[#allocation2] sm:$0x3]
    %v1329 = vld [vmem:[#allocation3] sm:$0x3]
    %v1330 = vpack.c.bf16 %v1328, %v1328
    %s1331 = scalar_lea.vmem [#allocation4], 24
    %v1332 = vld [vmem:[%s1331] sm:$0x1]
    %v1333 = vld [vmem:[%s1331 + $0x1] sm:$0x1]
    %v1334 = vld [vmem:[%s1331 + $0x2] sm:$0x1]
    %v1335 = vld [vmem:[%s1331 + $0x3] sm:$0x1]
    %v1336 = vunpack.c.l.bf16 %v1332
    %v1338 = vsel %vm87, %v1330, 0
    %1340 = vmatprep.subr.bf16.mxu0 0
    %1341 = vmatpush1.bf16.msra.mxu0 %v83
    %1342 = vmatprep.subr.bf16.mxu0 0
    %1343 = vmatpush1.bf16.msra.mxu0 %v84
    %1344 = vmatprep.subr.bf16.mxu0 0
    %1345 = vmatpush1.bf16.msra.mxu0 0
    %1346 = vmatprep.subr.bf16.mxu0 0
    %1347 = vmatpush1.bf16.msra.mxu0 0
    %1348 = vmatprep.subr.bf16.mxu0 0
    %1349 = vmatpush1.bf16.msra.mxu0 0
    %1350 = vmatprep.subr.bf16.mxu0 0
    %1351 = vmatpush1.bf16.msra.mxu0 0
    %1352 = vmatprep.subr.bf16.mxu0 0
    %1353 = vmatpush1.bf16.msra.mxu0 0
    %1354 = vmatprep.subr.bf16.mxu0 0
    %1355 = vmatpush1.bf16.msra.mxu0 0
    %1356 = vmatprep.subr.bf16.mxu0 0
    %1357 = vmatpush1.bf16.msra.mxu0 0
    %1358 = vmatprep.subr.bf16.mxu0 0
    %1359 = vmatpush1.bf16.msra.mxu0 0
    %1360 = vmatprep.subr.bf16.mxu0 0
    %1361 = vmatpush1.bf16.msra.mxu0 0
    %1362 = vmatprep.subr.bf16.mxu0 0
    %1363 = vmatpush1.bf16.msra.mxu0 0
    %1364 = vmatprep.subr.bf16.mxu0 0
    %1365 = vmatpush1.bf16.msra.mxu0 0
    %1366 = vmatprep.subr.bf16.mxu0 0
    %1367 = vmatpush1.bf16.msra.mxu0 0
    %1368 = vmatprep.subr.bf16.mxu0 0
    %1369 = vmatpush1.bf16.msra.mxu0 0
    %1370 = vmatprep.subr.bf16.mxu0 0
    %1371 = vmatpush1.bf16.msra.mxu0 0
    %1372 = vmatprep.mubr.bf16.mxu0 0
    %1373 = vmatmul.mubr.bf16.gmra.mrb[0].mxu0 %v1338
    %v1374 = vpop.f32.mrb[0].mxu0
    %v1375 = vadd.f32 0.0, %v1374
    %v1376 = vpop.f32.mrb[0].mxu0
    %v1377 = vpop.f32.mrb[0].mxu0
    %v1378 = vpop.f32.mrb[0].mxu0
    %1379 = vdwg.mxu0
    %v1380 = vadd.f32 %v1336, %v1375
    %v1381 = vunpack.c.l.bf16 %v1333
    %1382 = vmatprep.subr.bf16.mxu0 0
    %1383 = vmatpush1.bf16.msra.mxu0 %v141
    %1384 = vmatprep.subr.bf16.mxu0 0
    %1385 = vmatpush1.bf16.msra.mxu0 %v142
    %1386 = vmatprep.subr.bf16.mxu0 0
    %1387 = vmatpush1.bf16.msra.mxu0 0
    %1388 = vmatprep.subr.bf16.mxu0 0
    %1389 = vmatpush1.bf16.msra.mxu0 0
    %1390 = vmatprep.subr.bf16.mxu0 0
    %1391 = vmatpush1.bf16.msra.mxu0 0
    %1392 = vmatprep.subr.bf16.mxu0 0
    %1393 = vmatpush1.bf16.msra.mxu0 0
    %1394 = vmatprep.subr.bf16.mxu0 0
    %1395 = vmatpush1.bf16.msra.mxu0 0
    %1396 = vmatprep.subr.bf16.mxu0 0
    %1397 = vmatpush1.bf16.msra.mxu0 0
    %1398 = vmatprep.subr.bf16.mxu0 0
    %1399 = vmatpush1.bf16.msra.mxu0 0
    %1400 = vmatprep.subr.bf16.mxu0 0
    %1401 = vmatpush1.bf16.msra.mxu0 0
    %1402 = vmatprep.subr.bf16.mxu0 0
    %1403 = vmatpush1.bf16.msra.mxu0 0
    %1404 = vmatprep.subr.bf16.mxu0 0
    %1405 = vmatpush1.bf16.msra.mxu0 0
    %1406 = vmatprep.subr.bf16.mxu0 0
    %1407 = vmatpush1.bf16.msra.mxu0 0
    %1408 = vmatprep.subr.bf16.mxu0 0
    %1409 = vmatpush1.bf16.msra.mxu0 0
    %1410 = vmatprep.subr.bf16.mxu0 0
    %1411 = vmatpush1.bf16.msra.mxu0 0
    %1412 = vmatprep.subr.bf16.mxu0 0
    %1413 = vmatpush1.bf16.msra.mxu0 0
    %1414 = vmatprep.mubr.bf16.mxu0 0
    %1415 = vmatmul.mubr.bf16.gmra.mrb[0].mxu0 %v1338
    %v1416 = vpop.f32.mrb[0].mxu0
    %v1417 = vadd.f32 0.0, %v1416
    %v1418 = vpop.f32.mrb[0].mxu0
    %v1419 = vpop.f32.mrb[0].mxu0
    %v1420 = vpop.f32.mrb[0].mxu0
    %1421 = vdwg.mxu0
    %v1422 = vadd.f32 %v1381, %v1417
    %v1423 = vunpack.c.l.bf16 %v1334
    %1424 = vmatprep.subr.bf16.mxu0 0
    %1425 = vmatpush1.bf16.msra.mxu0 %v195
    %1426 = vmatprep.subr.bf16.mxu0 0
    %1427 = vmatpush1.bf16.msra.mxu0 %v196
    %1428 = vmatprep.subr.bf16.mxu0 0
    %1429 = vmatpush1.bf16.msra.mxu0 0
    %1430 = vmatprep.subr.bf16.mxu0 0
    %1431 = vmatpush1.bf16.msra.mxu0 0
    %1432 = vmatprep.subr.bf16.mxu0 0
    %1433 = vmatpush1.bf16.msra.mxu0 0
    %1434 = vmatprep.subr.bf16.mxu0 0
    %1435 = vmatpush1.bf16.msra.mxu0 0
    %1436 = vmatprep.subr.bf16.mxu0 0
    %1437 = vmatpush1.bf16.msra.mxu0 0
    %1438 = vmatprep.subr.bf16.mxu0 0
    %1439 = vmatpush1.bf16.msra.mxu0 0
    %1440 = vmatprep.subr.bf16.mxu0 0
    %1441 = vmatpush1.bf16.msra.mxu0 0
    %1442 = vmatprep.subr.bf16.mxu0 0
    %1443 = vmatpush1.bf16.msra.mxu0 0
    %1444 = vmatprep.subr.bf16.mxu0 0
    %1445 = vmatpush1.bf16.msra.mxu0 0
    %1446 = vmatprep.subr.bf16.mxu0 0
    %1447 = vmatpush1.bf16.msra.mxu0 0
    %1448 = vmatprep.subr.bf16.mxu0 0
    %1449 = vmatpush1.bf16.msra.mxu0 0
    %1450 = vmatprep.subr.bf16.mxu0 0
    %1451 = vmatpush1.bf16.msra.mxu0 0
    %1452 = vmatprep.subr.bf16.mxu0 0
    %1453 = vmatpush1.bf16.msra.mxu0 0
    %1454 = vmatprep.subr.bf16.mxu0 0
    %1455 = vmatpush1.bf16.msra.mxu0 0
    %1456 = vmatprep.mubr.bf16.mxu0 0
    %1457 = vmatmul.mubr.bf16.gmra.mrb[0].mxu0 %v1338
    %v1458 = vpop.f32.mrb[0].mxu0
    %v1459 = vadd.f32 0.0, %v1458
    %v1460 = vpop.f32.mrb[0].mxu0
    %v1461 = vpop.f32.mrb[0].mxu0
    %v1462 = vpop.f32.mrb[0].mxu0
    %1463 = vdwg.mxu0
    %v1464 = vadd.f32 %v1423, %v1459
    %v1465 = vunpack.c.l.bf16 %v1335
    %1466 = vmatprep.subr.bf16.mxu0 0
    %1467 = vmatpush1.bf16.msra.mxu0 %v249
    %1468 = vmatprep.subr.bf16.mxu0 0
    %1469 = vmatpush1.bf16.msra.mxu0 %v250
    %1470 = vmatprep.subr.bf16.mxu0 0
    %1471 = vmatpush1.bf16.msra.mxu0 0
    %1472 = vmatprep.subr.bf16.mxu0 0
    %1473 = vmatpush1.bf16.msra.mxu0 0
    %1474 = vmatprep.subr.bf16.mxu0 0
    %1475 = vmatpush1.bf16.msra.mxu0 0
    %1476 = vmatprep.subr.bf16.mxu0 0
    %1477 = vmatpush1.bf16.msra.mxu0 0
    %1478 = vmatprep.subr.bf16.mxu0 0
    %1479 = vmatpush1.bf16.msra.mxu0 0
    %1480 = vmatprep.subr.bf16.mxu0 0
    %1481 = vmatpush1.bf16.msra.mxu0 0
    %1482 = vmatprep.subr.bf16.mxu0 0
    %1483 = vmatpush1.bf16.msra.mxu0 0
    %1484 = vmatprep.subr.bf16.mxu0 0
    %1485 = vmatpush1.bf16.msra.mxu0 0
    %1486 = vmatprep.subr.bf16.mxu0 0
    %1487 = vmatpush1.bf16.msra.mxu0 0
    %1488 = vmatprep.subr.bf16.mxu0 0
    %1489 = vmatpush1.bf16.msra.mxu0 0
    %1490 = vmatprep.subr.bf16.mxu0 0
    %1491 = vmatpush1.bf16.msra.mxu0 0
    %1492 = vmatprep.subr.bf16.mxu0 0
    %1493 = vmatpush1.bf16.msra.mxu0 0
    %1494 = vmatprep.subr.bf16.mxu0 0
    %1495 = vmatpush1.bf16.msra.mxu0 0
    %1496 = vmatprep.subr.bf16.mxu0 0
    %1497 = vmatpush1.bf16.msra.mxu0 0
    %1498 = vmatprep.mubr.bf16.mxu0 0
    %1499 = vmatmul.mubr.bf16.gmra.mrb[0].mxu0 %v1338
    %v1500 = vpop.f32.mrb[0].mxu0
    %v1501 = vadd.f32 0.0, %v1500
    %v1502 = vpop.f32.mrb[0].mxu0
    %v1503 = vpop.f32.mrb[0].mxu0
    %v1504 = vpop.f32.mrb[0].mxu0
    %1505 = vdwg.mxu0
    %v1506 = vadd.f32 %v1465, %v1501
    %v1507 = vmul.f32 %v1380, 0.5
    %v1508 = vtanh.pop %v1507
    %v1509 = vmul.f32 %v1508, 0.5
    %v1510 = vadd.f32 %v1509, 0.5
    %v1511 = vmul.f32 %v1422, 0.5
    %v1512 = vtanh.pop %v1511
    %v1513 = vmul.f32 %v1512, 0.5
    %v1514 = vadd.f32 %v1513, 0.5
    %v1515 = vmul.f32 %v1506, 0.5
    %v1516 = vtanh.pop %v1515
    %v1517 = vmul.f32 %v1516, 0.5
    %v1518 = vadd.f32 %v1517, 0.5
    %v1519 = vtanh.pop %v1464
    %v1520 = vmul.f32 %v1514, %v1329
    %v1521 = vmul.f32 %v1510, %v1519
    %v1522 = vadd.f32 %v1520, %v1521
    %v1523 = vtanh.pop %v1522
    %v1524 = vmul.f32 %v1518, %v1523
    %1525 = vst.msk [vmem:[#allocation3] sm:$0x3] %vm312, %v1522
    %1526 = vst.msk [vmem:[#allocation2] sm:$0x3] %vm312, %v1524
    %v1527 = vpack.c.bf16 %v1524, %v1524
    %s1528 = scalar_lea.vmem [#allocation9], 6
    %1529 = vst.msk [vmem:[%s1528] sm:$0x1] %vm316, %v1527
    %v1530 = vld [vmem:[#allocation2] sm:$0x3]
    %v1531 = vld [vmem:[#allocation3] sm:$0x3]
    %v1532 = vpack.c.bf16 %v1530, %v1530
    %s1533 = scalar_lea.vmem [#allocation4], 28
    %v1534 = vld [vmem:[%s1533] sm:$0x1]
    %v1535 = vld [vmem:[%s1533 + $0x1] sm:$0x1]
    %v1536 = vld [vmem:[%s1533 + $0x2] sm:$0x1]
    %v1537 = vld [vmem:[%s1533 + $0x3] sm:$0x1]
    %v1538 = vunpack.c.l.bf16 %v1534
    %v1540 = vsel %vm87, %v1532, 0
    %1542 = vmatprep.subr.bf16.mxu0 0
    %1543 = vmatpush1.bf16.msra.mxu0 %v83
    %1544 = vmatprep.subr.bf16.mxu0 0
    %1545 = vmatpush1.bf16.msra.mxu0 %v84
    %1546 = vmatprep.subr.bf16.mxu0 0
    %1547 = vmatpush1.bf16.msra.mxu0 0
    %1548 = vmatprep.subr.bf16.mxu0 0
    %1549 = vmatpush1.bf16.msra.mxu0 0
    %1550 = vmatprep.subr.bf16.mxu0 0
    %1551 = vmatpush1.bf16.msra.mxu0 0
    %1552 = vmatprep.subr.bf16.mxu0 0
    %1553 = vmatpush1.bf16.msra.mxu0 0
    %1554 = vmatprep.subr.bf16.mxu0 0
    %1555 = vmatpush1.bf16.msra.mxu0 0
    %1556 = vmatprep.subr.bf16.mxu0 0
    %1557 = vmatpush1.bf16.msra.mxu0 0
    %1558 = vmatprep.subr.bf16.mxu0 0
    %1559 = vmatpush1.bf16.msra.mxu0 0
    %1560 = vmatprep.subr.bf16.mxu0 0
    %1561 = vmatpush1.bf16.msra.mxu0 0
    %1562 = vmatprep.subr.bf16.mxu0 0
    %1563 = vmatpush1.bf16.msra.mxu0 0
    %1564 = vmatprep.subr.bf16.mxu0 0
    %1565 = vmatpush1.bf16.msra.mxu0 0
    %1566 = vmatprep.subr.bf16.mxu0 0
    %1567 = vmatpush1.bf16.msra.mxu0 0
    %1568 = vmatprep.subr.bf16.mxu0 0
    %1569 = vmatpush1.bf16.msra.mxu0 0
    %1570 = vmatprep.subr.bf16.mxu0 0
    %1571 = vmatpush1.bf16.msra.mxu0 0
    %1572 = vmatprep.subr.bf16.mxu0 0
    %1573 = vmatpush1.bf16.msra.mxu0 0
    %1574 = vmatprep.mubr.bf16.mxu0 0
    %1575 = vmatmul.mubr.bf16.gmra.mrb[0].mxu0 %v1540
    %v1576 = vpop.f32.mrb[0].mxu0
    %v1577 = vadd.f32 0.0, %v1576
    %v1578 = vpop.f32.mrb[0].mxu0
    %v1579 = vpop.f32.mrb[0].mxu0
    %v1580 = vpop.f32.mrb[0].mxu0
    %1581 = vdwg.mxu0
    %v1582 = vadd.f32 %v1538, %v1577
    %v1583 = vunpack.c.l.bf16 %v1535
    %1584 = vmatprep.subr.bf16.mxu0 0
    %1585 = vmatpush1.bf16.msra.mxu0 %v141
    %1586 = vmatprep.subr.bf16.mxu0 0
    %1587 = vmatpush1.bf16.msra.mxu0 %v142
    %1588 = vmatprep.subr.bf16.mxu0 0
    %1589 = vmatpush1.bf16.msra.mxu0 0
    %1590 = vmatprep.subr.bf16.mxu0 0
    %1591 = vmatpush1.bf16.msra.mxu0 0
    %1592 = vmatprep.subr.bf16.mxu0 0
    %1593 = vmatpush1.bf16.msra.mxu0 0
    %1594 = vmatprep.subr.bf16.mxu0 0
    %1595 = vmatpush1.bf16.msra.mxu0 0
    %1596 = vmatprep.subr.bf16.mxu0 0
    %1597 = vmatpush1.bf16.msra.mxu0 0
    %1598 = vmatprep.subr.bf16.mxu0 0
    %1599 = vmatpush1.bf16.msra.mxu0 0
    %1600 = vmatprep.subr.bf16.mxu0 0
    %1601 = vmatpush1.bf16.msra.mxu0 0
    %1602 = vmatprep.subr.bf16.mxu0 0
    %1603 = vmatpush1.bf16.msra.mxu0 0
    %1604 = vmatprep.subr.bf16.mxu0 0
    %1605 = vmatpush1.bf16.msra.mxu0 0
    %1606 = vmatprep.subr.bf16.mxu0 0
    %1607 = vmatpush1.bf16.msra.mxu0 0
    %1608 = vmatprep.subr.bf16.mxu0 0
    %1609 = vmatpush1.bf16.msra.mxu0 0
    %1610 = vmatprep.subr.bf16.mxu0 0
    %1611 = vmatpush1.bf16.msra.mxu0 0
    %1612 = vmatprep.subr.bf16.mxu0 0
    %1613 = vmatpush1.bf16.msra.mxu0 0
    %1614 = vmatprep.subr.bf16.mxu0 0
    %1615 = vmatpush1.bf16.msra.mxu0 0
    %1616 = vmatprep.mubr.bf16.mxu0 0
    %1617 = vmatmul.mubr.bf16.gmra.mrb[0].mxu0 %v1540
    %v1618 = vpop.f32.mrb[0].mxu0
    %v1619 = vadd.f32 0.0, %v1618
    %v1620 = vpop.f32.mrb[0].mxu0
    %v1621 = vpop.f32.mrb[0].mxu0
    %v1622 = vpop.f32.mrb[0].mxu0
    %1623 = vdwg.mxu0
    %v1624 = vadd.f32 %v1583, %v1619
    %v1625 = vunpack.c.l.bf16 %v1536
    %1626 = vmatprep.subr.bf16.mxu0 0
    %1627 = vmatpush1.bf16.msra.mxu0 %v195
    %1628 = vmatprep.subr.bf16.mxu0 0
    %1629 = vmatpush1.bf16.msra.mxu0 %v196
    %1630 = vmatprep.subr.bf16.mxu0 0
    %1631 = vmatpush1.bf16.msra.mxu0 0
    %1632 = vmatprep.subr.bf16.mxu0 0
    %1633 = vmatpush1.bf16.msra.mxu0 0
    %1634 = vmatprep.subr.bf16.mxu0 0
    %1635 = vmatpush1.bf16.msra.mxu0 0
    %1636 = vmatprep.subr.bf16.mxu0 0
    %1637 = vmatpush1.bf16.msra.mxu0 0
    %1638 = vmatprep.subr.bf16.mxu0 0
    %1639 = vmatpush1.bf16.msra.mxu0 0
    %1640 = vmatprep.subr.bf16.mxu0 0
    %1641 = vmatpush1.bf16.msra.mxu0 0
    %1642 = vmatprep.subr.bf16.mxu0 0
    %1643 = vmatpush1.bf16.msra.mxu0 0
    %1644 = vmatprep.subr.bf16.mxu0 0
    %1645 = vmatpush1.bf16.msra.mxu0 0
    %1646 = vmatprep.subr.bf16.mxu0 0
    %1647 = vmatpush1.bf16.msra.mxu0 0
    %1648 = vmatprep.subr.bf16.mxu0 0
    %1649 = vmatpush1.bf16.msra.mxu0 0
    %1650 = vmatprep.subr.bf16.mxu0 0
    %1651 = vmatpush1.bf16.msra.mxu0 0
    %1652 = vmatprep.subr.bf16.mxu0 0
    %1653 = vmatpush1.bf16.msra.mxu0 0
    %1654 = vmatprep.subr.bf16.mxu0 0
    %1655 = vmatpush1.bf16.msra.mxu0 0
    %1656 = vmatprep.subr.bf16.mxu0 0
    %1657 = vmatpush1.bf16.msra.mxu0 0
    %1658 = vmatprep.mubr.bf16.mxu0 0
    %1659 = vmatmul.mubr.bf16.gmra.mrb[0].mxu0 %v1540
    %v1660 = vpop.f32.mrb[0].mxu0
    %v1661 = vadd.f32 0.0, %v1660
    %v1662 = vpop.f32.mrb[0].mxu0
    %v1663 = vpop.f32.mrb[0].mxu0
    %v1664 = vpop.f32.mrb[0].mxu0
    %1665 = vdwg.mxu0
    %v1666 = vadd.f32 %v1625, %v1661
    %v1667 = vunpack.c.l.bf16 %v1537
    %1668 = vmatprep.subr.bf16.mxu0 0
    %1669 = vmatpush1.bf16.msra.mxu0 %v249
    %1670 = vmatprep.subr.bf16.mxu0 0
    %1671 = vmatpush1.bf16.msra.mxu0 %v250
    %1672 = vmatprep.subr.bf16.mxu0 0
    %1673 = vmatpush1.bf16.msra.mxu0 0
    %1674 = vmatprep.subr.bf16.mxu0 0
    %1675 = vmatpush1.bf16.msra.mxu0 0
    %1676 = vmatprep.subr.bf16.mxu0 0
    %1677 = vmatpush1.bf16.msra.mxu0 0
    %1678 = vmatprep.subr.bf16.mxu0 0
    %1679 = vmatpush1.bf16.msra.mxu0 0
    %1680 = vmatprep.subr.bf16.mxu0 0
    %1681 = vmatpush1.bf16.msra.mxu0 0
    %1682 = vmatprep.subr.bf16.mxu0 0
    %1683 = vmatpush1.bf16.msra.mxu0 0
    %1684 = vmatprep.subr.bf16.mxu0 0
    %1685 = vmatpush1.bf16.msra.mxu0 0
    %1686 = vmatprep.subr.bf16.mxu0 0
    %1687 = vmatpush1.bf16.msra.mxu0 0
    %1688 = vmatprep.subr.bf16.mxu0 0
    %1689 = vmatpush1.bf16.msra.mxu0 0
    %1690 = vmatprep.subr.bf16.mxu0 0
    %1691 = vmatpush1.bf16.msra.mxu0 0
    %1692 = vmatprep.subr.bf16.mxu0 0
    %1693 = vmatpush1.bf16.msra.mxu0 0
    %1694 = vmatprep.subr.bf16.mxu0 0
    %1695 = vmatpush1.bf16.msra.mxu0 0
    %1696 = vmatprep.subr.bf16.mxu0 0
    %1697 = vmatpush1.bf16.msra.mxu0 0
    %1698 = vmatprep.subr.bf16.mxu0 0
    %1699 = vmatpush1.bf16.msra.mxu0 0
    %1700 = vmatprep.mubr.bf16.mxu0 0
    %1701 = vmatmul.mubr.bf16.gmra.mrb[0].mxu0 %v1540
    %v1702 = vpop.f32.mrb[0].mxu0
    %v1703 = vadd.f32 0.0, %v1702
    %v1704 = vpop.f32.mrb[0].mxu0
    %v1705 = vpop.f32.mrb[0].mxu0
    %v1706 = vpop.f32.mrb[0].mxu0
    %1707 = vdwg.mxu0
    %v1708 = vadd.f32 %v1667, %v1703
    %v1709 = vmul.f32 %v1582, 0.5
    %v1710 = vtanh.pop %v1709
    %v1711 = vmul.f32 %v1710, 0.5
    %v1712 = vadd.f32 %v1711, 0.5
    %v1713 = vmul.f32 %v1624, 0.5
    %v1714 = vtanh.pop %v1713
    %v1715 = vmul.f32 %v1714, 0.5
    %v1716 = vadd.f32 %v1715, 0.5
    %v1717 = vmul.f32 %v1708, 0.5
    %v1718 = vtanh.pop %v1717
    %v1719 = vmul.f32 %v1718, 0.5
    %v1720 = vadd.f32 %v1719, 0.5
    %v1721 = vtanh.pop %v1666
    %v1722 = vmul.f32 %v1716, %v1531
    %v1723 = vmul.f32 %v1712, %v1721
    %v1724 = vadd.f32 %v1722, %v1723
    %v1725 = vtanh.pop %v1724
    %v1726 = vmul.f32 %v1720, %v1725
    %1727 = vst.msk [vmem:[#allocation3] sm:$0x3] %vm312, %v1724
    %1728 = vst.msk [vmem:[#allocation2] sm:$0x3] %vm312, %v1726
    %v1729 = vpack.c.bf16 %v1726, %v1726
    %s1730 = scalar_lea.vmem [#allocation9], 7
    %1731 = vst.msk [vmem:[%s1730] sm:$0x1] %vm316, %v1729
    // Predicated region
    $region22: #{tpu_custom_call.1} parent=1 // pred_check
      _
    $region23: #{tpu_custom_call.1} parent=1 // pred_check_branch
      %1733 = sbr.rel (0) target = $region25
    $region24: #{tpu_custom_call.1} parent=1 // pred_region
      %s1735 = ssub.s32 128, 128
      %1736 = vsyncadd [#allocation6], %s1735
      %s1737 = sshll.u32 [#allocation9], 4
      %s1738 = int_to_ptr.vmem [resolvable:$true] %s1737
      %1743 = dma.vmem_to_hbm [thread:$0]  %s1738, 128, %s2, [#allocation6], 16, 16, 1
    $region25: #{tpu_custom_call.1} parent=1 // pred_fallthru
      _
    // Predicated region
    $region26: #{tpu_custom_call.1} parent=1 // pred_check
      _
    $region27: #{tpu_custom_call.1} parent=1 // pred_check_branch
      %1745 = sbr.rel (0) target = $region29
    $region28: #{tpu_custom_call.1} parent=1 // pred_region
      %1746 = dma.done [#allocation6], 128
    $region29: #{tpu_custom_call.1} parent=1 // pred_fallthru
      _
    %1747 = vsyncpa [#allocation5], 1
    %1748 = vsyncpa [#allocation8], 1
    %1749 = vsyncpa [#allocation6], 1

</llo_original>
